<compile_context>
chip_gen: v7x
topology: tpu7x:2x2x1
jax: 0.10.0
libtpu: 0.0.40
codegen_flags: <defaults>
</compile_context>

<pallas_src>
import jax
import jax.numpy as jnp
from jax.experimental import pallas as pl
from jax.experimental.pallas import tpu as pltpu

LAYER_NORM_EPS = 1e-12


def output_kernel(x_ref, w_ref, b_ref, res_ref, gamma_ref, beta_ref, o_ref):
    # Dense on the MXU: bf16 operands (as provided), f32 accumulation.
    y = jnp.dot(x_ref[...], w_ref[...], preferred_element_type=jnp.float32)
    y = y + b_ref[...].astype(jnp.float32)

    # TODO(synk): dropout is identity in eval mode (inference); training-mode
    # stochastic dropout (pltpu.prng_*) is not implemented here.

    # Residual add in f32.
    y = y + res_ref[...].astype(jnp.float32)

    # Two-pass LayerNorm statistics (mean, then centered variance) — avoids
    # the E[y^2]-mean^2 cancellation issue; extra VPU pass is hidden under DMA.
    h = y.shape[-1]
    inv_h = 1.0 / float(h)
    mean = jnp.sum(y, axis=-1, keepdims=True) * inv_h
    yc = y - mean
    var = jnp.sum(yc * yc, axis=-1, keepdims=True) * inv_h
    inv = jax.lax.rsqrt(var + LAYER_NORM_EPS)

    out = yc * inv
    out = out * gamma_ref[...].astype(jnp.float32) + beta_ref[...].astype(jnp.float32)
    o_ref[...] = out.astype(o_ref.dtype)


def _pick_tm(M, tm, min_steps=4):
    """Row-tile size: multiple of 8, and >= min_steps grid steps when M allows
    (>= 2 pipelined steps per TensorCore on v7x)."""
    tm = max(8, min(tm, M))
    tm -= tm % 8
    while M >= min_steps * 8 and pl.cdiv(M, tm) < min_steps and tm > 8:
        half = tm // 2
        tm = max(8, half - (half % 8))
    return tm


def output_forward(hidden_states, input_tensor, w, b, gamma, beta, *,
                   tm=512, out_dtype=None):
    """Fused BERT `Output` forward.

    hidden_states: [B, S, I]   intermediate activations (ideally already bf16)
    input_tensor:  [B, S, H]   residual
    w:             [I, H]      PyTorch Linear weight [H, I] pre-transposed,
                               ideally converted to bf16 once at init
    b, gamma, beta: [H]
    """
    B, S, I = hidden_states.shape
    H = input_tensor.shape[-1]
    M = B * S
    if out_dtype is None:
        out_dtype = input_tensor.dtype
    out_itemsize = jnp.dtype(out_dtype).itemsize

    tm = _pick_tm(M, tm)

    x2 = hidden_states.reshape(M, I)          # no dtype cast here (done upstream)
    r2 = input_tensor.reshape(M, H)
    b2 = b.reshape(1, H)
    g2 = gamma.reshape(1, H)
    be2 = beta.reshape(1, H)

    # VMEM budget: double-buffered x / residual / output tiles, single-buffered
    # weight + per-channel vectors, plus headroom.
    vmem_budget = (
        2 * tm * I * x2.dtype.itemsize
        + 2 * tm * H * r2.dtype.itemsize
        + 2 * tm * H * out_itemsize
        + I * H * w.dtype.itemsize
        + 3 * H * 4
    )
    vmem_limit = min(max(int(1.5 * vmem_budget) + (2 << 20), 32 << 20), 64 << 20)

    cost = pl.CostEstimate(
        flops=2 * M * I * H,
        transcendentals=M,  # one rsqrt per row
        bytes_accessed=(
            M * I * x2.dtype.itemsize       # x read
            + M * H * r2.dtype.itemsize     # residual read
            + M * H * out_itemsize          # output write
            + I * H * w.dtype.itemsize      # weight read
            + 3 * H * 4                     # bias / gamma / beta
        ),
    )

    out = pl.pallas_call(
        output_kernel,
        out_shape=jax.ShapeDtypeStruct((M, H), out_dtype),
        grid_spec=pl.GridSpec(
            grid=(pl.cdiv(M, tm),),
            in_specs=[
                # Per-tile streams: default double-buffering.
                pl.BlockSpec((tm, I), lambda i: (i, 0)),   # x tile
                # Grid-invariant operands: single-buffered (VMEM resident).
                pl.BlockSpec((I, H), lambda i: (0, 0),
                             pipeline_mode=pl.Buffered(1)),  # W
                pl.BlockSpec((1, H), lambda i: (0, 0),
                             pipeline_mode=pl.Buffered(1)),  # bias
                pl.BlockSpec((tm, H), lambda i: (i, 0)),   # residual tile
                pl.BlockSpec((1, H), lambda i: (0, 0),
                             pipeline_mode=pl.Buffered(1)),  # gamma
                pl.BlockSpec((1, H), lambda i: (0, 0),
                             pipeline_mode=pl.Buffered(1)),  # beta
            ],
            out_specs=pl.BlockSpec((tm, H), lambda i: (i, 0)),
        ),
        compiler_params=pltpu.CompilerParams(
            dimension_semantics=("parallel",),   # shard M tiles across TCs (v7x)
            vmem_limit_bytes=vmem_limit,
        ),
        cost_estimate=cost,
    )(x2, w, b2, r2, g2, be2)
    return out.reshape(B, S, H)


def reference(hidden_states, input_tensor, w, b, gamma, beta):
    # Same bf16-operand / f32-accumulation matmul as the kernel, then f32 math.
    y = jnp.einsum(
        "bsi,ih->bsh",
        hidden_states.astype(jnp.bfloat16),
        w.astype(jnp.bfloat16),
        preferred_element_type=jnp.float32,
    )
    y = y + b.astype(jnp.float32)
    y = y + input_tensor.astype(jnp.float32)
    mean = jnp.mean(y, axis=-1, keepdims=True)
    var = jnp.mean((y - mean) ** 2, axis=-1, keepdims=True)
    return (y - mean) / jnp.sqrt(var + LAYER_NORM_EPS) * gamma + beta


if __name__ == "__main__":
    # Small but lane-dense shapes (H multiple of 128, M large enough that the
    # grid gets >= 4 steps and pipelines): B=2, S=256, I=512, H=256 -> M=512.
    batch, seq = 2, 256
    intermediate, hidden = 512, 256

    key = jax.random.PRNGKey(0)
    k1, k2, k3, k4 = jax.random.split(key, 4)

    # Upstream intermediate/GELU activations arrive in bf16 (no in-kernel cast,
    # half the x DMA bytes).
    hidden_states = jax.random.normal(
        k1, (batch, seq, intermediate), dtype=jnp.float32).astype(jnp.bfloat16)
    input_tensor = jax.random.normal(
        k2, (batch, seq, hidden), dtype=jnp.float32)

    # nn.Linear-like uniform init; PyTorch weight is [out=H, in=I], stored here
    # already transposed to [I, H]. LayerNorm: gamma=1, beta=0.
    bound = 1.0 / (intermediate ** 0.5)
    w = jax.random.uniform(k3, (intermediate, hidden), minval=-bound,
                           maxval=bound, dtype=jnp.float32)
    b = jax.random.uniform(k4, (hidden,), minval=-bound, maxval=bound,
                           dtype=jnp.float32)
    gamma = jnp.ones((hidden,), dtype=jnp.float32)
    beta = jnp.zeros((hidden,), dtype=jnp.float32)

    # One-time init conversion (hoisted out of the forward path).
    w_bf16 = jax.block_until_ready(w.astype(jnp.bfloat16))

    out = output_forward(hidden_states, input_tensor, w_bf16, b, gamma, beta,
                         tm=512, out_dtype=jnp.bfloat16)
    out = jax.block_until_ready(out)

    ref = reference(hidden_states, input_tensor, w_bf16, b, gamma, beta)
    assert out.shape == (batch, seq, hidden)
    assert out.dtype == jnp.bfloat16
    assert jnp.allclose(out.astype(jnp.float32), ref, atol=5e-2, rtol=5e-2), \
        "mismatch vs reference"

    print("KERNEL_OK")
</pallas_src>

<mosaic_0001>
module attributes {stable_mosaic.version = 11 : i64} {
  func.func @output_kernel(%arg0: i32, %arg1: memref<128x512xbf16, #tpu.memory_space<vmem>>, %arg2: memref<512x256xbf16, #tpu.memory_space<vmem>>, %arg3: memref<1x256xf32, #tpu.memory_space<vmem>>, %arg4: memref<128x256xf32, #tpu.memory_space<vmem>>, %arg5: memref<1x256xf32, #tpu.memory_space<vmem>>, %arg6: memref<1x256xf32, #tpu.memory_space<vmem>>, %arg7: memref<128x256xbf16, #tpu.memory_space<vmem>>) attributes {dimension_semantics = [#tpu.dimension_semantics<parallel>], iteration_bounds = array<i64: 4>, scalar_prefetch = 0 : i64, scratch_operands = 0 : i64, tpu.core_type = #tpu.core_type<tc>, window_params = [{transform_indices = @transform_0, window_bounds = array<i64: 128, 512>}, {pipeline_mode = #tpu.pipeline_mode<synchronous>, transform_indices = @transform_1, window_bounds = array<i64: 512, 256>}, {pipeline_mode = #tpu.pipeline_mode<synchronous>, transform_indices = @transform_2, window_bounds = array<i64: 1, 256>}, {transform_indices = @transform_3, window_bounds = array<i64: 128, 256>}, {pipeline_mode = #tpu.pipeline_mode<synchronous>, transform_indices = @transform_4, window_bounds = array<i64: 1, 256>}, {pipeline_mode = #tpu.pipeline_mode<synchronous>, transform_indices = @transform_5, window_bounds = array<i64: 1, 256>}, {transform_indices = @transform_6, window_bounds = array<i64: 128, 256>}]} {
    %c0 = arith.constant 0 : index
    %c0_0 = arith.constant 0 : index
    %0 = vector.load %arg1[%c0, %c0_0] : memref<128x512xbf16, #tpu.memory_space<vmem>>, vector<128x512xbf16>
    %c0_1 = arith.constant 0 : index
    %c0_2 = arith.constant 0 : index
    %1 = vector.load %arg2[%c0_1, %c0_2] : memref<512x256xbf16, #tpu.memory_space<vmem>>, vector<512x256xbf16>
    %cst = arith.constant dense<0.000000e+00> : vector<128x256xf32>
    %2 = tpu.matmul %0, %1, %cst {dimension_numbers = #tpu.dot_dimension_numbers<[1], [0], [0], [1], [0, 0, 1, 1], [], []>} : vector<128x512xbf16>, vector<512x256xbf16>, vector<128x256xf32> -> vector<128x256xf32>
    %c0_3 = arith.constant 0 : index
    %c0_4 = arith.constant 0 : index
    %3 = vector.load %arg3[%c0_3, %c0_4] : memref<1x256xf32, #tpu.memory_space<vmem>>, vector<1x256xf32>
    %4 = vector.broadcast %3 : vector<1x256xf32> to vector<128x256xf32>
    %5 = arith.addf %2, %4 : vector<128x256xf32>
    %c0_5 = arith.constant 0 : index
    %c0_6 = arith.constant 0 : index
    %6 = vector.load %arg4[%c0_5, %c0_6] : memref<128x256xf32, #tpu.memory_space<vmem>>, vector<128x256xf32>
    %7 = arith.addf %5, %6 : vector<128x256xf32>
    %cst_7 = arith.constant dense<0.000000e+00> : vector<128xf32>
    %8 = vector.multi_reduction <add>, %7, %cst_7 [1] : vector<128x256xf32> to vector<128xf32>
    %9 = vector.shape_cast %8 : vector<128xf32> to vector<128x1xf32>
    %cst_8 = arith.constant 3.906250e-03 : f32
    %10 = vector.broadcast %cst_8 : f32 to vector<128x1xf32>
    %11 = arith.mulf %9, %10 : vector<128x1xf32>
    %12 = vector.broadcast %11 : vector<128x1xf32> to vector<128x256xf32>
    %13 = arith.subf %7, %12 : vector<128x256xf32>
    %14 = arith.mulf %13, %13 : vector<128x256xf32>
    %cst_9 = arith.constant dense<0.000000e+00> : vector<128xf32>
    %15 = vector.multi_reduction <add>, %14, %cst_9 [1] : vector<128x256xf32> to vector<128xf32>
    %16 = vector.shape_cast %15 : vector<128xf32> to vector<128x1xf32>
    %cst_10 = arith.constant 3.906250e-03 : f32
    %17 = vector.broadcast %cst_10 : f32 to vector<128x1xf32>
    %18 = arith.mulf %16, %17 : vector<128x1xf32>
    %cst_11 = arith.constant 9.99999996E-13 : f32
    %19 = vector.broadcast %cst_11 : f32 to vector<128x1xf32>
    %20 = arith.addf %18, %19 : vector<128x1xf32>
    %21 = math.rsqrt %20 : vector<128x1xf32>
    %22 = vector.broadcast %21 : vector<128x1xf32> to vector<128x256xf32>
    %23 = arith.mulf %13, %22 : vector<128x256xf32>
    %c0_12 = arith.constant 0 : index
    %c0_13 = arith.constant 0 : index
    %24 = vector.load %arg5[%c0_12, %c0_13] : memref<1x256xf32, #tpu.memory_space<vmem>>, vector<1x256xf32>
    %25 = vector.broadcast %24 : vector<1x256xf32> to vector<128x256xf32>
    %26 = arith.mulf %23, %25 : vector<128x256xf32>
    %c0_14 = arith.constant 0 : index
    %c0_15 = arith.constant 0 : index
    %27 = vector.load %arg6[%c0_14, %c0_15] : memref<1x256xf32, #tpu.memory_space<vmem>>, vector<1x256xf32>
    %28 = vector.broadcast %27 : vector<1x256xf32> to vector<128x256xf32>
    %29 = arith.addf %26, %28 : vector<128x256xf32>
    %30 = arith.truncf %29 : vector<128x256xf32> to vector<128x256xbf16>
    %c0_16 = arith.constant 0 : index
    %c0_17 = arith.constant 0 : index
    %31 = vector.load %arg7[%c0_16, %c0_17] : memref<128x256xbf16, #tpu.memory_space<vmem>>, vector<128x256xbf16>
    tpu.vector_store %arg7[%c0_16, %c0_17], %30 {strides = array<i32>} : memref<128x256xbf16, #tpu.memory_space<vmem>>, vector<128x256xbf16>,
    return
  }
  func.func @transform_0(%arg0: i32) -> (i32, i32) {
    %c0_i32 = arith.constant 0 : i32
    %c0_i32_0 = arith.constant 0 : i32
    return %arg0, %c0_i32 : i32, i32
  }
  func.func @transform_1(%arg0: i32) -> (i32, i32) {
    %c0_i32 = arith.constant 0 : i32
    %c0_i32_0 = arith.constant 0 : i32
    %c0_i32_1 = arith.constant 0 : i32
    return %c0_i32, %c0_i32_0 : i32, i32
  }
  func.func @transform_2(%arg0: i32) -> (i32, i32) {
    %c0_i32 = arith.constant 0 : i32
    %c0_i32_0 = arith.constant 0 : i32
    %c0_i32_1 = arith.constant 0 : i32
    return %c0_i32, %c0_i32_0 : i32, i32
  }
  func.func @transform_3(%arg0: i32) -> (i32, i32) {
    %c0_i32 = arith.constant 0 : i32
    %c0_i32_0 = arith.constant 0 : i32
    return %arg0, %c0_i32 : i32, i32
  }
  func.func @transform_4(%arg0: i32) -> (i32, i32) {
    %c0_i32 = arith.constant 0 : i32
    %c0_i32_0 = arith.constant 0 : i32
    %c0_i32_1 = arith.constant 0 : i32
    return %c0_i32, %c0_i32_0 : i32, i32
  }
  func.func @transform_5(%arg0: i32) -> (i32, i32) {
    %c0_i32 = arith.constant 0 : i32
    %c0_i32_0 = arith.constant 0 : i32
    %c0_i32_1 = arith.constant 0 : i32
    return %c0_i32, %c0_i32_0 : i32, i32
  }
  func.func @transform_6(%arg0: i32) -> (i32, i32) {
    %c0_i32 = arith.constant 0 : i32
    %c0_i32_0 = arith.constant 0 : i32
    return %arg0, %c0_i32 : i32, i32
  }
}

</mosaic_0001>

<llo_original>
// kernel: tpu_custom_call.1
$region0: #{tpu_custom_call.1}
  #allocation0 [shape = 'u32[]', space=smem, size = 0x4, offset = 0x4, fixed_abs, tag = 'smem constant byte address 0x4 - core index']
  #allocation1 [shape = 'u32[144,128]{1,0:T(1,128)}', space=vmem, size = 0x12000, scoped, tag = 'internal scratch']
  %s0 = inlined_call_operand.hbm [shape: bf16[512,512], index: 0, kind: input, shape index: {}]
  %s1 = inlined_call_operand.hbm [shape: bf16[512,256], index: 1, kind: input, shape index: {}]
  %s2 = inlined_call_operand.vmem [shape: f32[1,256], index: 2, kind: input, shape index: {}]
  %s3 = inlined_call_operand.hbm [shape: f32[512,256], index: 3, kind: input, shape index: {}]
  %s4 = inlined_call_operand.vmem [shape: f32[1,256], index: 4, kind: input, shape index: {}]
  %s5 = inlined_call_operand.vmem [shape: f32[1,256], index: 5, kind: input, shape index: {}]
  %s6 = inlined_call_operand.hbm [shape: bf16[512,256], index: 6, kind: output, shape index: {}]
  %s7 = sld [smem:[#allocation0]]
  $region69: #{tpu_custom_call.1} parent=0
    _
  %s9 = ssub.s32 1, %s7
  %s10 = scalar_select 0, %s9, %s7
  $region1: #{tpu_custom_call.1} parent=0
    #allocation2 [shape = 'u8[262144]{0}', space=vmem, size = 0x40000, scoped, tag = 'input window, operand 0']
    #allocation3 [shape = 's32[2]{0}', space=sflag, size = 0x8, scoped, tag = 'scoped memory for tpu_custom_call.1']
    #allocation4 [shape = 's32[2]{0}', space=sflag, size = 0x8, scoped, tag = 'scoped memory for tpu_custom_call.1']
    #allocation5 [shape = 'u8[262144]{0}', space=vmem, size = 0x40000, scoped, tag = 'input window, operand 1, single buffered']
    #allocation6 [shape = 's32[1]{0}', space=sflag, size = 0x4, scoped, tag = 'scoped memory for tpu_custom_call.1']
    #allocation7 [shape = 'u8[262144]{0}', space=vmem, size = 0x40000, scoped, tag = 'input window, operand 3']
    #allocation8 [shape = 'u8[131072]{0}', space=vmem, size = 0x20000, scoped, tag = 'output window, operand 0']
    %11 = vsyncpa [#allocation3], 0
    %s12 = scalar_lea.sflag [#allocation3], 1
    %13 = vsyncpa %s12, 0
    %14 = vsyncpa [#allocation6], 0
    %15 = vsyncpa [#allocation4], 0
    %s16 = scalar_lea.sflag [#allocation4], 1
    %17 = vsyncpa %s16, 0
    loop: start=0, step=1, limit=6
    $region2: #{tpu_custom_call.1} parent=1 // loop_pre_header
      _
    $region3: #{tpu_custom_call.1} parent=1 // loop_header
      %s19 = sphi 0, %s23
      %p20 = scmp.ge.s32.totalorder %s19, 6
      %s29 = sphi 0, %s31
      %s32 = sphi 0, %s29
      %s33 = sphi 0, %s32
      %s49 = sphi 0, %s33
      %s53 = sphi 0, %s53
      %s55 = sphi 0, %s53
      %s56 = sphi 0, %s55
      %s70 = sphi 0, %s56
      %s74 = sphi 0, %s74
      %s76 = sphi 0, %s74
      %s77 = sphi 0, %s76
      %s91 = sphi 0, %s77
      %s97 = sphi 0, %s99
      %s100 = sphi 0, %s97
      %s101 = sphi 0, %s100
      %s117 = sphi 0, %s101
      %s121 = sphi 0, %s121
      %s123 = sphi 0, %s121
      %s124 = sphi 0, %s123
      %s138 = sphi 0, %s124
      %s142 = sphi 0, %s142
      %s144 = sphi 0, %s142
      %s145 = sphi 0, %s144
      %s159 = sphi 0, %s145
      %s165 = sphi 0, %s167
      %s168 = sphi 0, %s165
      %s169 = sphi 0, %s168
      %s185 = sphi 0, %s169
    $region4: #{tpu_custom_call.1} parent=1 // loop_header_branch
      %22 = sbr.rel (%p20) target = $region8
    $region5: #{tpu_custom_call.1} parent=1 // loop_body
      %s24 = ssub.s32 %s19, 1
      %s25 = ssub.s32 %s19, 2
      %s26 = sadd.s32 %s19, 1
      %s27 = ssub.s32 %s19, %s26
      %p28 = scmp.eq.s32.totalorder %s27, 0
      %s30 = sadd.s32 %s29, 1
      %s31 = scalar_select %p28, %s29, %s30
      %p34 = pneg %p28
      %p35 = scmp.eq.s32.totalorder %s19, 3
      %p36 = por %p34, %p35
      %p37 = scmp.ne.s32.totalorder %s29, %s32
      %p38 = scmp.eq.s32.totalorder %s19, 0
      %p39 = por %p37, %p38
      %p40 = scmp.ne.s32.totalorder %s29, %s32
      %p41 = scmp.eq.s32.totalorder %s24, 3
      %p42 = por %p40, %p41
      %p43 = scmp.ne.s32.totalorder %s32, %s33
      %p44 = scmp.eq.s32.totalorder %s24, 0
      %p45 = por %p43, %p44
      %p46 = scmp.ne.s32.totalorder %s32, %s33
      %p47 = scmp.eq.s32.totalorder %s25, 3
      %p48 = por %p46, %p47
      %p50 = scmp.ne.s32.totalorder %s33, %s49
      %p51 = scmp.eq.s32.totalorder %s25, 0
      %p52 = por %p50, %p51
      %s54 = sadd.s32 %s53, 1
      %p57 = scmp.eq.s32.totalorder %s19, 3
      %p58 = scmp.ne.s32.totalorder %s53, %s55
      %p59 = scmp.eq.s32.totalorder %s19, 0
      %p60 = por %p58, %p59
      %p61 = scmp.ne.s32.totalorder %s53, %s55
      %p62 = scmp.eq.s32.totalorder %s24, 3
      %p63 = por %p61, %p62
      %p64 = scmp.ne.s32.totalorder %s55, %s56
      %p65 = scmp.eq.s32.totalorder %s24, 0
      %p66 = por %p64, %p65
      %p67 = scmp.ne.s32.totalorder %s55, %s56
      %p68 = scmp.eq.s32.totalorder %s25, 3
      %p69 = por %p67, %p68
      %p71 = scmp.ne.s32.totalorder %s56, %s70
      %p72 = scmp.eq.s32.totalorder %s25, 0
      %p73 = por %p71, %p72
      %s75 = sadd.s32 %s74, 1
      %p78 = scmp.eq.s32.totalorder %s19, 3
      %p79 = scmp.ne.s32.totalorder %s74, %s76
      %p80 = scmp.eq.s32.totalorder %s19, 0
      %p81 = por %p79, %p80
      %p82 = scmp.ne.s32.totalorder %s74, %s76
      %p83 = scmp.eq.s32.totalorder %s24, 3
      %p84 = por %p82, %p83
      %p85 = scmp.ne.s32.totalorder %s76, %s77
      %p86 = scmp.eq.s32.totalorder %s24, 0
      %p87 = por %p85, %p86
      %p88 = scmp.ne.s32.totalorder %s76, %s77
      %p89 = scmp.eq.s32.totalorder %s25, 3
      %p90 = por %p88, %p89
      %p92 = scmp.ne.s32.totalorder %s77, %s91
      %p93 = scmp.eq.s32.totalorder %s25, 0
      %p94 = por %p92, %p93
      %s95 = ssub.s32 %s19, %s26
      %p96 = scmp.eq.s32.totalorder %s95, 0
      %s98 = sadd.s32 %s97, 1
      %s99 = scalar_select %p96, %s97, %s98
      %p102 = pneg %p96
      %p103 = scmp.eq.s32.totalorder %s19, 3
      %p104 = por %p102, %p103
      %p105 = scmp.ne.s32.totalorder %s97, %s100
      %p106 = scmp.eq.s32.totalorder %s19, 0
      %p107 = por %p105, %p106
      %p108 = scmp.ne.s32.totalorder %s97, %s100
      %p109 = scmp.eq.s32.totalorder %s24, 3
      %p110 = por %p108, %p109
      %p111 = scmp.ne.s32.totalorder %s100, %s101
      %p112 = scmp.eq.s32.totalorder %s24, 0
      %p113 = por %p111, %p112
      %p114 = scmp.ne.s32.totalorder %s100, %s101
      %p115 = scmp.eq.s32.totalorder %s25, 3
      %p116 = por %p114, %p115
      %p118 = scmp.ne.s32.totalorder %s101, %s117
      %p119 = scmp.eq.s32.totalorder %s25, 0
      %p120 = por %p118, %p119
      %s122 = sadd.s32 %s121, 1
      %p125 = scmp.eq.s32.totalorder %s19, 3
      %p126 = scmp.ne.s32.totalorder %s121, %s123
      %p127 = scmp.eq.s32.totalorder %s19, 0
      %p128 = por %p126, %p127
      %p129 = scmp.ne.s32.totalorder %s121, %s123
      %p130 = scmp.eq.s32.totalorder %s24, 3
      %p131 = por %p129, %p130
      %p132 = scmp.ne.s32.totalorder %s123, %s124
      %p133 = scmp.eq.s32.totalorder %s24, 0
      %p134 = por %p132, %p133
      %p135 = scmp.ne.s32.totalorder %s123, %s124
      %p136 = scmp.eq.s32.totalorder %s25, 3
      %p137 = por %p135, %p136
      %p139 = scmp.ne.s32.totalorder %s124, %s138
      %p140 = scmp.eq.s32.totalorder %s25, 0
      %p141 = por %p139, %p140
      %s143 = sadd.s32 %s142, 1
      %p146 = scmp.eq.s32.totalorder %s19, 3
      %p147 = scmp.ne.s32.totalorder %s142, %s144
      %p148 = scmp.eq.s32.totalorder %s19, 0
      %p149 = por %p147, %p148
      %p150 = scmp.ne.s32.totalorder %s142, %s144
      %p151 = scmp.eq.s32.totalorder %s24, 3
      %p152 = por %p150, %p151
      %p153 = scmp.ne.s32.totalorder %s144, %s145
      %p154 = scmp.eq.s32.totalorder %s24, 0
      %p155 = por %p153, %p154
      %p156 = scmp.ne.s32.totalorder %s144, %s145
      %p157 = scmp.eq.s32.totalorder %s25, 3
      %p158 = por %p156, %p157
      %p160 = scmp.ne.s32.totalorder %s145, %s159
      %p161 = scmp.eq.s32.totalorder %s25, 0
      %p162 = por %p160, %p161
      %s163 = ssub.s32 %s19, %s26
      %p164 = scmp.eq.s32.totalorder %s163, 0
      %s166 = sadd.s32 %s165, 1
      %s167 = scalar_select %p164, %s165, %s166
      %p170 = pneg %p164
      %p171 = scmp.eq.s32.totalorder %s19, 3
      %p172 = por %p170, %p171
      %p173 = scmp.ne.s32.totalorder %s165, %s168
      %p174 = scmp.eq.s32.totalorder %s19, 0
      %p175 = por %p173, %p174
      %p176 = scmp.ne.s32.totalorder %s165, %s168
      %p177 = scmp.eq.s32.totalorder %s24, 3
      %p178 = por %p176, %p177
      %p179 = scmp.ne.s32.totalorder %s168, %s169
      %p180 = scmp.eq.s32.totalorder %s24, 0
      %p181 = por %p179, %p180
      %p182 = scmp.ne.s32.totalorder %s168, %s169
      %p183 = scmp.eq.s32.totalorder %s25, 3
      %p184 = por %p182, %p183
      %p186 = scmp.ne.s32.totalorder %s169, %s185
      %p187 = scmp.eq.s32.totalorder %s25, 0
      %p188 = por %p186, %p187
      %p189 = scmp.le.s32.totalorder 1, %s19
      %p190 = scmp.lt.s32.totalorder %s19, 5
      %p191 = pnand %p189, %p190
      %p192 = pneg %p191
      // Predicated region
      $region9: #{tpu_custom_call.1} parent=5 // pred_check
        _
      $region10: #{tpu_custom_call.1} parent=5 // pred_check_branch
        %194 = sbr.rel (%p191) target = $region12
      $region11: #{tpu_custom_call.1} parent=5 // pred_region
        %s195 = ssub.s32 %s19, 1
        // Predicated region
        $region13: #{tpu_custom_call.1} parent=11 // pred_check
          %p196 = pneg %p66
        $region14: #{tpu_custom_call.1} parent=11 // pred_check_branch
          %198 = sbr.rel (%p196) target = $region16
        $region15: #{tpu_custom_call.1} parent=11 // pred_region
          %s200 = ssub.s32 8192, 8192
          %201 = vsyncadd [#allocation6], %s200
          %s202 = sshll.u32 [#allocation5], 4
          %s203 = int_to_ptr.vmem [resolvable:$true] %s202
          %208 = dma.hbm_to_vmem [thread:$0]  %s1, 8192, %s203, [#allocation6], 128, 128, 8
        $region16: #{tpu_custom_call.1} parent=11 // pred_fallthru
          _
        // Predicated region
        $region17: #{tpu_custom_call.1} parent=11 // pred_check
          %p209 = pneg %p87
        $region18: #{tpu_custom_call.1} parent=11 // pred_check_branch
          %211 = sbr.rel (%p209) target = $region20
        $region19: #{tpu_custom_call.1} parent=11 // pred_region
          _
        $region20: #{tpu_custom_call.1} parent=11 // pred_fallthru
          _
        // Predicated region
        $region21: #{tpu_custom_call.1} parent=11 // pred_check
          %p212 = pneg %p134
        $region22: #{tpu_custom_call.1} parent=11 // pred_check_branch
          %214 = sbr.rel (%p212) target = $region24
        $region23: #{tpu_custom_call.1} parent=11 // pred_region
          _
        $region24: #{tpu_custom_call.1} parent=11 // pred_fallthru
          _
        // Predicated region
        $region25: #{tpu_custom_call.1} parent=11 // pred_check
          %p215 = pneg %p155
        $region26: #{tpu_custom_call.1} parent=11 // pred_check_branch
          %217 = sbr.rel (%p215) target = $region28
        $region27: #{tpu_custom_call.1} parent=11 // pred_region
          _
        $region28: #{tpu_custom_call.1} parent=11 // pred_fallthru
          _
      $region12: #{tpu_custom_call.1} parent=5 // pred_fallthru
        _
      %p218 = scmp.lt.s32.totalorder %s19, 4
      // Predicated region
      $region29: #{tpu_custom_call.1} parent=5 // pred_check
        %p219 = pneg %p218
      $region30: #{tpu_custom_call.1} parent=5 // pred_check_branch
        %221 = sbr.rel (%p219) target = $region32
      $region31: #{tpu_custom_call.1} parent=5 // pred_region
        // Predicated region
        $region33: #{tpu_custom_call.1} parent=31 // pred_check
          %p222 = pneg %p39
        $region34: #{tpu_custom_call.1} parent=31 // pred_check_branch
          %224 = sbr.rel (%p222) target = $region36
        $region35: #{tpu_custom_call.1} parent=31 // pred_region
          %s225 = sand.u32 %s19, 1
          %s226 = scalar_lea.sflag [#allocation3], %s225
          %s227 = sand.u32 %s29, 1
          %s228 = smul.addr %s227, 256
          %s229 = scalar_lea.vmem [#allocation2], %s228
          %s230 = smul.u32 16, %s19
          %s232 = ssub.s32 4096, 4096
          %233 = vsyncadd %s226, %s232
          %s234 = smul.addr %s230, 4
          %s235 = smul.addr %s234, 64
          %s236 = scalar_lea.hbm %s0, %s235
          %s237 = sshll.u32 %s229, 4
          %s238 = int_to_ptr.vmem [resolvable:$true] %s237
          %243 = dma.hbm_to_vmem [thread:$0]  %s236, 4096, %s238, %s226, 256, 256, 16
        $region36: #{tpu_custom_call.1} parent=31 // pred_fallthru
          _
        // Predicated region
        $region37: #{tpu_custom_call.1} parent=31 // pred_check
          %p244 = pneg %p107
        $region38: #{tpu_custom_call.1} parent=31 // pred_check_branch
          %246 = sbr.rel (%p244) target = $region40
        $region39: #{tpu_custom_call.1} parent=31 // pred_region
          %s247 = sand.u32 %s19, 1
          %s248 = scalar_lea.sflag [#allocation3], %s247
          %s249 = sand.u32 %s97, 1
          %s250 = smul.addr %s249, 256
          %s251 = scalar_lea.vmem [#allocation7], %s250
          %s252 = smul.u32 16, %s19
          %s254 = ssub.s32 4096, 4096
          %255 = vsyncadd %s248, %s254
          %s256 = smul.addr %s252, 2
          %s257 = smul.addr %s256, 128
          %s258 = scalar_lea.hbm %s3, %s257
          %s259 = sshll.u32 %s251, 4
          %s260 = int_to_ptr.vmem [resolvable:$true] %s259
          %265 = dma.hbm_to_vmem [thread:$0]  %s258, 4096, %s260, %s248, 256, 256, 16
        $region40: #{tpu_custom_call.1} parent=31 // pred_fallthru
          _
      $region32: #{tpu_custom_call.1} parent=5 // pred_fallthru
        _
      %p266 = scmp.le.s32.totalorder 1, %s19
      %p267 = scmp.lt.s32.totalorder %s19, 5
      %p268 = pnand %p266, %p267
      %p269 = pneg %p268
      // Predicated region
      $region41: #{tpu_custom_call.1} parent=5 // pred_check
        _
      $region42: #{tpu_custom_call.1} parent=5 // pred_check_branch
        %271 = sbr.rel (%p268) target = $region44
      $region43: #{tpu_custom_call.1} parent=5 // pred_region
        %s272 = ssub.s32 %s19, 1
        %s273 = sand.u32 %s24, 1
        %s274 = scalar_lea.sflag [#allocation3], %s273
        %s275 = sand.u32 %s32, 1
        %s276 = smul.addr %s275, 256
        %s277 = scalar_lea.vmem [#allocation2], %s276
        // Predicated region
        $region45: #{tpu_custom_call.1} parent=43 // pred_check
          %p278 = pneg %p45
        $region46: #{tpu_custom_call.1} parent=43 // pred_check_branch
          %280 = sbr.rel (%p278) target = $region48
        $region47: #{tpu_custom_call.1} parent=43 // pred_region
          %281 = dma.done %s274, 4096
        $region48: #{tpu_custom_call.1} parent=43 // pred_fallthru
          _
        // Predicated region
        $region49: #{tpu_custom_call.1} parent=43 // pred_check
          %p282 = pneg %p66
        $region50: #{tpu_custom_call.1} parent=43 // pred_check_branch
          %284 = sbr.rel (%p282) target = $region52
        $region51: #{tpu_custom_call.1} parent=43 // pred_region
          %285 = dma.done [#allocation6], 8192
        $region52: #{tpu_custom_call.1} parent=43 // pred_fallthru
          _
        %s286 = sand.u32 %s24, 1
        %s287 = scalar_lea.sflag [#allocation3], %s286
        %s288 = sand.u32 %s100, 1
        %s289 = smul.addr %s288, 256
        %s290 = scalar_lea.vmem [#allocation7], %s289
        // Predicated region
        $region53: #{tpu_custom_call.1} parent=43 // pred_check
          %p291 = pneg %p113
        $region54: #{tpu_custom_call.1} parent=43 // pred_check_branch
          %293 = sbr.rel (%p291) target = $region56
        $region55: #{tpu_custom_call.1} parent=43 // pred_region
          %294 = dma.done %s287, 4096
        $region56: #{tpu_custom_call.1} parent=43 // pred_fallthru
          _
        %s295 = sand.u32 %s24, 1
        %s296 = scalar_lea.sflag [#allocation3], %s295
        %s297 = sand.u32 %s32, 1
        %s298 = smul.addr %s297, 256
        %s299 = scalar_lea.vmem [#allocation2], %s298
        %p300 = pneg %p45
        %p301 = pneg %p42
        %p302 = pneg %p66
        %p303 = pneg %p63
        %p304 = pneg %p87
        %p305 = pneg %p84
        %s306 = sand.u32 %s24, 1
        %s307 = scalar_lea.sflag [#allocation3], %s306
        %s308 = sand.u32 %s100, 1
        %s309 = smul.addr %s308, 256
        %s310 = scalar_lea.vmem [#allocation7], %s309
        %p311 = pneg %p113
        %p312 = pneg %p110
        %p313 = pneg %p134
        %p314 = pneg %p131
        %p315 = pneg %p155
        %p316 = pneg %p152
        %p317 = pneg %p181
        %p318 = pneg %p178
        %s319 = sand.u32 %s168, 1
        %s320 = scalar_lea.sflag [#allocation4], %s319
        %s321 = sand.u32 %s168, 1
        %s322 = smul.addr %s321, 128
        %s323 = scalar_lea.vmem [#allocation8], %s322
        %s324 = smul.u32 16, %s24
        %s325 = smul.u32 16, %s24
        %s326 = smul.u32 16, %s24
        %v327 = vld [vmem:[%s277] sm:$0xff]
        %v328 = vld [vmem:[%s277 + $0x8] sm:$0xff]
        %v329 = vld [vmem:[%s277 + $0x10] sm:$0xff]
        %v330 = vld [vmem:[%s277 + $0x18] sm:$0xff]
        %v331 = vld [vmem:[%s277 + $0x20] sm:$0xff]
        %v332 = vld [vmem:[%s277 + $0x28] sm:$0xff]
        %v333 = vld [vmem:[%s277 + $0x30] sm:$0xff]
        %v334 = vld [vmem:[%s277 + $0x38] sm:$0xff]
        %v335 = vld [vmem:[%s277 + $0x40] sm:$0xff]
        %v336 = vld [vmem:[%s277 + $0x48] sm:$0xff]
        %v337 = vld [vmem:[%s277 + $0x50] sm:$0xff]
        %v338 = vld [vmem:[%s277 + $0x58] sm:$0xff]
        %v339 = vld [vmem:[%s277 + $0x60] sm:$0xff]
        %v340 = vld [vmem:[%s277 + $0x68] sm:$0xff]
        %v341 = vld [vmem:[%s277 + $0x70] sm:$0xff]
        %v342 = vld [vmem:[%s277 + $0x78] sm:$0xff]
        %v343 = vld [vmem:[%s277 + $0x80] sm:$0xff]
        %v344 = vld [vmem:[%s277 + $0x88] sm:$0xff]
        %v345 = vld [vmem:[%s277 + $0x90] sm:$0xff]
        %v346 = vld [vmem:[%s277 + $0x98] sm:$0xff]
        %v347 = vld [vmem:[%s277 + $0xa0] sm:$0xff]
        %v348 = vld [vmem:[%s277 + $0xa8] sm:$0xff]
        %v349 = vld [vmem:[%s277 + $0xb0] sm:$0xff]
        %v350 = vld [vmem:[%s277 + $0xb8] sm:$0xff]
        %v351 = vld [vmem:[%s277 + $0xc0] sm:$0xff]
        %v352 = vld [vmem:[%s277 + $0xc8] sm:$0xff]
        %v353 = vld [vmem:[%s277 + $0xd0] sm:$0xff]
        %v354 = vld [vmem:[%s277 + $0xd8] sm:$0xff]
        %v355 = vld [vmem:[%s277 + $0xe0] sm:$0xff]
        %v356 = vld [vmem:[%s277 + $0xe8] sm:$0xff]
        %v357 = vld [vmem:[%s277 + $0xf0] sm:$0xff]
        %v358 = vld [vmem:[%s277 + $0xf8] sm:$0xff]
        %v359 = vld [vmem:[#allocation5] sm:$0xff]
        %v360 = vld [vmem:[#allocation5 + $0x8] sm:$0xff]
        %v361 = vld [vmem:[#allocation5 + $0x10] sm:$0xff]
        %v362 = vld [vmem:[#allocation5 + $0x18] sm:$0xff]
        %v363 = vld [vmem:[#allocation5 + $0x20] sm:$0xff]
        %v364 = vld [vmem:[#allocation5 + $0x28] sm:$0xff]
        %v365 = vld [vmem:[#allocation5 + $0x30] sm:$0xff]
        %v366 = vld [vmem:[#allocation5 + $0x38] sm:$0xff]
        %v367 = vld [vmem:[#allocation5 + $0x40] sm:$0xff]
        %v368 = vld [vmem:[#allocation5 + $0x48] sm:$0xff]
        %v369 = vld [vmem:[#allocation5 + $0x50] sm:$0xff]
        %v370 = vld [vmem:[#allocation5 + $0x58] sm:$0xff]
        %v371 = vld [vmem:[#allocation5 + $0x60] sm:$0xff]
        %v372 = vld [vmem:[#allocation5 + $0x68] sm:$0xff]
        %v373 = vld [vmem:[#allocation5 + $0x70] sm:$0xff]
        %v374 = vld [vmem:[#allocation5 + $0x78] sm:$0xff]
        %v375 = vld [vmem:[#allocation5 + $0x80] sm:$0xff]
        %v376 = vld [vmem:[#allocation5 + $0x88] sm:$0xff]
        %v377 = vld [vmem:[#allocation5 + $0x90] sm:$0xff]
        %v378 = vld [vmem:[#allocation5 + $0x98] sm:$0xff]
        %v379 = vld [vmem:[#allocation5 + $0xa0] sm:$0xff]
        %v380 = vld [vmem:[#allocation5 + $0xa8] sm:$0xff]
        %v381 = vld [vmem:[#allocation5 + $0xb0] sm:$0xff]
        %v382 = vld [vmem:[#allocation5 + $0xb8] sm:$0xff]
        %v383 = vld [vmem:[#allocation5 + $0xc0] sm:$0xff]
        %v384 = vld [vmem:[#allocation5 + $0xc8] sm:$0xff]
        %v385 = vld [vmem:[#allocation5 + $0xd0] sm:$0xff]
        %v386 = vld [vmem:[#allocation5 + $0xd8] sm:$0xff]
        %v387 = vld [vmem:[#allocation5 + $0xe0] sm:$0xff]
        %v388 = vld [vmem:[#allocation5 + $0xe8] sm:$0xff]
        %v389 = vld [vmem:[#allocation5 + $0xf0] sm:$0xff]
        %v390 = vld [vmem:[#allocation5 + $0xf8] sm:$0xff]
        %v391 = vld [vmem:[#allocation5 + $0x100] sm:$0xff]
        %v392 = vld [vmem:[#allocation5 + $0x108] sm:$0xff]
        %v393 = vld [vmem:[#allocation5 + $0x110] sm:$0xff]
        %v394 = vld [vmem:[#allocation5 + $0x118] sm:$0xff]
        %v395 = vld [vmem:[#allocation5 + $0x120] sm:$0xff]
        %v396 = vld [vmem:[#allocation5 + $0x128] sm:$0xff]
        %v397 = vld [vmem:[#allocation5 + $0x130] sm:$0xff]
        %v398 = vld [vmem:[#allocation5 + $0x138] sm:$0xff]
        %v399 = vld [vmem:[#allocation5 + $0x140] sm:$0xff]
        %v400 = vld [vmem:[#allocation5 + $0x148] sm:$0xff]
        %v401 = vld [vmem:[#allocation5 + $0x150] sm:$0xff]
        %v402 = vld [vmem:[#allocation5 + $0x158] sm:$0xff]
        %v403 = vld [vmem:[#allocation5 + $0x160] sm:$0xff]
        %v404 = vld [vmem:[#allocation5 + $0x168] sm:$0xff]
        %v405 = vld [vmem:[#allocation5 + $0x170] sm:$0xff]
        %v406 = vld [vmem:[#allocation5 + $0x178] sm:$0xff]
        %v407 = vld [vmem:[#allocation5 + $0x180] sm:$0xff]
        %v408 = vld [vmem:[#allocation5 + $0x188] sm:$0xff]
        %v409 = vld [vmem:[#allocation5 + $0x190] sm:$0xff]
        %v410 = vld [vmem:[#allocation5 + $0x198] sm:$0xff]
        %v411 = vld [vmem:[#allocation5 + $0x1a0] sm:$0xff]
        %v412 = vld [vmem:[#allocation5 + $0x1a8] sm:$0xff]
        %v413 = vld [vmem:[#allocation5 + $0x1b0] sm:$0xff]
        %v414 = vld [vmem:[#allocation5 + $0x1b8] sm:$0xff]
        %v415 = vld [vmem:[#allocation5 + $0x1c0] sm:$0xff]
        %v416 = vld [vmem:[#allocation5 + $0x1c8] sm:$0xff]
        %v417 = vld [vmem:[#allocation5 + $0x1d0] sm:$0xff]
        %v418 = vld [vmem:[#allocation5 + $0x1d8] sm:$0xff]
        %v419 = vld [vmem:[#allocation5 + $0x1e0] sm:$0xff]
        %v420 = vld [vmem:[#allocation5 + $0x1e8] sm:$0xff]
        %v421 = vld [vmem:[#allocation5 + $0x1f0] sm:$0xff]
        %v422 = vld [vmem:[#allocation5 + $0x1f8] sm:$0xff]
        %v423 = vld [vmem:[%s2] sm:$0x3]
        %v425 = vlaneseq
        %v426 = vshrl.u32 %v425, 7
        %v427 = vsub.s32 0, %v426
        %v428 = vrot.slane %v423, %v427
        %v429 = vlaneseq
        %v430 = vshrl.u32 %v429, 7
        %v431 = vsub.s32 1, %v430
        %v432 = vrot.slane %v423, %v431
        %v467 = vunpack.c.l.b16 %v327
        %v468 = vunpack.c.h.b16 %v327
        %v469 = vunpack.c.l.b16 %v328
        %v470 = vunpack.c.h.b16 %v328
        %v471 = vunpack.c.l.b16 %v329
        %v472 = vunpack.c.h.b16 %v329
        %v473 = vunpack.c.l.b16 %v330
        %v474 = vunpack.c.h.b16 %v330
        %v475 = vunpack.c.l.b16 %v331
        %v476 = vunpack.c.h.b16 %v331
        %v477 = vunpack.c.l.b16 %v332
        %v478 = vunpack.c.h.b16 %v332
        %v479 = vunpack.c.l.b16 %v333
        %v480 = vunpack.c.h.b16 %v333
        %v481 = vunpack.c.l.b16 %v334
        %v482 = vunpack.c.h.b16 %v334
        %v483 = vunpack.c.l.b16 %v335
        %v484 = vunpack.c.h.b16 %v335
        %v485 = vunpack.c.l.b16 %v336
        %v486 = vunpack.c.h.b16 %v336
        %v487 = vunpack.c.l.b16 %v337
        %v488 = vunpack.c.h.b16 %v337
        %v489 = vunpack.c.l.b16 %v338
        %v490 = vunpack.c.h.b16 %v338
        %v491 = vunpack.c.l.b16 %v339
        %v492 = vunpack.c.h.b16 %v339
        %v493 = vunpack.c.l.b16 %v340
        %v494 = vunpack.c.h.b16 %v340
        %v495 = vunpack.c.l.b16 %v341
        %v496 = vunpack.c.h.b16 %v341
        %v497 = vunpack.c.l.b16 %v342
        %v498 = vunpack.c.h.b16 %v342
        %v499 = vunpack.c.l.b16 %v343
        %v500 = vunpack.c.h.b16 %v343
        %v501 = vunpack.c.l.b16 %v344
        %v502 = vunpack.c.h.b16 %v344
        %v503 = vunpack.c.l.b16 %v345
        %v504 = vunpack.c.h.b16 %v345
        %v505 = vunpack.c.l.b16 %v346
        %v506 = vunpack.c.h.b16 %v346
        %v507 = vunpack.c.l.b16 %v347
        %v508 = vunpack.c.h.b16 %v347
        %v509 = vunpack.c.l.b16 %v348
        %v510 = vunpack.c.h.b16 %v348
        %v511 = vunpack.c.l.b16 %v349
        %v512 = vunpack.c.h.b16 %v349
        %v513 = vunpack.c.l.b16 %v350
        %v514 = vunpack.c.h.b16 %v350
        %v515 = vunpack.c.l.b16 %v351
        %v516 = vunpack.c.h.b16 %v351
        %v517 = vunpack.c.l.b16 %v352
        %v518 = vunpack.c.h.b16 %v352
        %v519 = vunpack.c.l.b16 %v353
        %v520 = vunpack.c.h.b16 %v353
        %v521 = vunpack.c.l.b16 %v354
        %v522 = vunpack.c.h.b16 %v354
        %v523 = vunpack.c.l.b16 %v355
        %v524 = vunpack.c.h.b16 %v355
        %v525 = vunpack.c.l.b16 %v356
        %v526 = vunpack.c.h.b16 %v356
        %v527 = vunpack.c.l.b16 %v357
        %v528 = vunpack.c.h.b16 %v357
        %v529 = vunpack.c.l.b16 %v358
        %v530 = vunpack.c.h.b16 %v358
        %v531 = vpack.c.b16 %v471, %v467
        %v532 = vpack.c.b16 %v472, %v468
        %v533 = vpack.c.b16 %v473, %v469
        %v534 = vpack.c.b16 %v474, %v470
        %v535 = vpack.c.b16 %v479, %v475
        %v536 = vpack.c.b16 %v480, %v476
        %v537 = vpack.c.b16 %v481, %v477
        %v538 = vpack.c.b16 %v482, %v478
        %v539 = vpack.c.b16 %v487, %v483
        %v540 = vpack.c.b16 %v488, %v484
        %v541 = vpack.c.b16 %v489, %v485
        %v542 = vpack.c.b16 %v490, %v486
        %v543 = vpack.c.b16 %v495, %v491
        %v544 = vpack.c.b16 %v496, %v492
        %v545 = vpack.c.b16 %v497, %v493
        %v546 = vpack.c.b16 %v498, %v494
        %v547 = vpack.c.b16 %v503, %v499
        %v548 = vpack.c.b16 %v504, %v500
        %v549 = vpack.c.b16 %v505, %v501
        %v550 = vpack.c.b16 %v506, %v502
        %v551 = vpack.c.b16 %v511, %v507
        %v552 = vpack.c.b16 %v512, %v508
        %v553 = vpack.c.b16 %v513, %v509
        %v554 = vpack.c.b16 %v514, %v510
        %v555 = vpack.c.b16 %v519, %v515
        %v556 = vpack.c.b16 %v520, %v516
        %v557 = vpack.c.b16 %v521, %v517
        %v558 = vpack.c.b16 %v522, %v518
        %v559 = vpack.c.b16 %v527, %v523
        %v560 = vpack.c.b16 %v528, %v524
        %v561 = vpack.c.b16 %v529, %v525
        %v562 = vpack.c.b16 %v530, %v526
        %v659 = vunpack.c.l.b16 %v359
        %v660 = vunpack.c.h.b16 %v359
        %v661 = vunpack.c.l.b16 %v360
        %v662 = vunpack.c.h.b16 %v360
        %v663 = vunpack.c.l.b16 %v361
        %v664 = vunpack.c.h.b16 %v361
        %v665 = vunpack.c.l.b16 %v362
        %v666 = vunpack.c.h.b16 %v362
        %v667 = vunpack.c.l.b16 %v363
        %v668 = vunpack.c.h.b16 %v363
        %v669 = vunpack.c.l.b16 %v364
        %v670 = vunpack.c.h.b16 %v364
        %v671 = vunpack.c.l.b16 %v365
        %v672 = vunpack.c.h.b16 %v365
        %v673 = vunpack.c.l.b16 %v366
        %v674 = vunpack.c.h.b16 %v366
        %v675 = vunpack.c.l.b16 %v367
        %v676 = vunpack.c.h.b16 %v367
        %v677 = vunpack.c.l.b16 %v368
        %v678 = vunpack.c.h.b16 %v368
        %v679 = vunpack.c.l.b16 %v369
        %v680 = vunpack.c.h.b16 %v369
        %v681 = vunpack.c.l.b16 %v370
        %v682 = vunpack.c.h.b16 %v370
        %v683 = vunpack.c.l.b16 %v371
        %v684 = vunpack.c.h.b16 %v371
        %v685 = vunpack.c.l.b16 %v372
        %v686 = vunpack.c.h.b16 %v372
        %v687 = vunpack.c.l.b16 %v373
        %v688 = vunpack.c.h.b16 %v373
        %v689 = vunpack.c.l.b16 %v374
        %v690 = vunpack.c.h.b16 %v374
        %v691 = vunpack.c.l.b16 %v375
        %v692 = vunpack.c.h.b16 %v375
        %v693 = vunpack.c.l.b16 %v376
        %v694 = vunpack.c.h.b16 %v376
        %v695 = vunpack.c.l.b16 %v377
        %v696 = vunpack.c.h.b16 %v377
        %v697 = vunpack.c.l.b16 %v378
        %v698 = vunpack.c.h.b16 %v378
        %v699 = vunpack.c.l.b16 %v379
        %v700 = vunpack.c.h.b16 %v379
        %v701 = vunpack.c.l.b16 %v380
        %v702 = vunpack.c.h.b16 %v380
        %v703 = vunpack.c.l.b16 %v381
        %v704 = vunpack.c.h.b16 %v381
        %v705 = vunpack.c.l.b16 %v382
        %v706 = vunpack.c.h.b16 %v382
        %v707 = vunpack.c.l.b16 %v383
        %v708 = vunpack.c.h.b16 %v383
        %v709 = vunpack.c.l.b16 %v384
        %v710 = vunpack.c.h.b16 %v384
        %v711 = vunpack.c.l.b16 %v385
        %v712 = vunpack.c.h.b16 %v385
        %v713 = vunpack.c.l.b16 %v386
        %v714 = vunpack.c.h.b16 %v386
        %v715 = vunpack.c.l.b16 %v387
        %v716 = vunpack.c.h.b16 %v387
        %v717 = vunpack.c.l.b16 %v388
        %v718 = vunpack.c.h.b16 %v388
        %v719 = vunpack.c.l.b16 %v389
        %v720 = vunpack.c.h.b16 %v389
        %v721 = vunpack.c.l.b16 %v390
        %v722 = vunpack.c.h.b16 %v390
        %v723 = vunpack.c.l.b16 %v391
        %v724 = vunpack.c.h.b16 %v391
        %v725 = vunpack.c.l.b16 %v392
        %v726 = vunpack.c.h.b16 %v392
        %v727 = vunpack.c.l.b16 %v393
        %v728 = vunpack.c.h.b16 %v393
        %v729 = vunpack.c.l.b16 %v394
        %v730 = vunpack.c.h.b16 %v394
        %v731 = vunpack.c.l.b16 %v395
        %v732 = vunpack.c.h.b16 %v395
        %v733 = vunpack.c.l.b16 %v396
        %v734 = vunpack.c.h.b16 %v396
        %v735 = vunpack.c.l.b16 %v397
        %v736 = vunpack.c.h.b16 %v397
        %v737 = vunpack.c.l.b16 %v398
        %v738 = vunpack.c.h.b16 %v398
        %v739 = vunpack.c.l.b16 %v399
        %v740 = vunpack.c.h.b16 %v399
        %v741 = vunpack.c.l.b16 %v400
        %v742 = vunpack.c.h.b16 %v400
        %v743 = vunpack.c.l.b16 %v401
        %v744 = vunpack.c.h.b16 %v401
        %v745 = vunpack.c.l.b16 %v402
        %v746 = vunpack.c.h.b16 %v402
        %v747 = vunpack.c.l.b16 %v403
        %v748 = vunpack.c.h.b16 %v403
        %v749 = vunpack.c.l.b16 %v404
        %v750 = vunpack.c.h.b16 %v404
        %v751 = vunpack.c.l.b16 %v405
        %v752 = vunpack.c.h.b16 %v405
        %v753 = vunpack.c.l.b16 %v406
        %v754 = vunpack.c.h.b16 %v406
        %v755 = vunpack.c.l.b16 %v407
        %v756 = vunpack.c.h.b16 %v407
        %v757 = vunpack.c.l.b16 %v408
        %v758 = vunpack.c.h.b16 %v408
        %v759 = vunpack.c.l.b16 %v409
        %v760 = vunpack.c.h.b16 %v409
        %v761 = vunpack.c.l.b16 %v410
        %v762 = vunpack.c.h.b16 %v410
        %v763 = vunpack.c.l.b16 %v411
        %v764 = vunpack.c.h.b16 %v411
        %v765 = vunpack.c.l.b16 %v412
        %v766 = vunpack.c.h.b16 %v412
        %v767 = vunpack.c.l.b16 %v413
        %v768 = vunpack.c.h.b16 %v413
        %v769 = vunpack.c.l.b16 %v414
        %v770 = vunpack.c.h.b16 %v414
        %v771 = vunpack.c.l.b16 %v415
        %v772 = vunpack.c.h.b16 %v415
        %v773 = vunpack.c.l.b16 %v416
        %v774 = vunpack.c.h.b16 %v416
        %v775 = vunpack.c.l.b16 %v417
        %v776 = vunpack.c.h.b16 %v417
        %v777 = vunpack.c.l.b16 %v418
        %v778 = vunpack.c.h.b16 %v418
        %v779 = vunpack.c.l.b16 %v419
        %v780 = vunpack.c.h.b16 %v419
        %v781 = vunpack.c.l.b16 %v420
        %v782 = vunpack.c.h.b16 %v420
        %v783 = vunpack.c.l.b16 %v421
        %v784 = vunpack.c.h.b16 %v421
        %v785 = vunpack.c.l.b16 %v422
        %v786 = vunpack.c.h.b16 %v422
        %v787 = vpack.c.b16 %v661, %v659
        %v788 = vpack.c.b16 %v662, %v660
        %v789 = vpack.c.b16 %v665, %v663
        %v790 = vpack.c.b16 %v666, %v664
        %v791 = vpack.c.b16 %v669, %v667
        %v792 = vpack.c.b16 %v670, %v668
        %v793 = vpack.c.b16 %v673, %v671
        %v794 = vpack.c.b16 %v674, %v672
        %v795 = vpack.c.b16 %v677, %v675
        %v796 = vpack.c.b16 %v678, %v676
        %v797 = vpack.c.b16 %v681, %v679
        %v798 = vpack.c.b16 %v682, %v680
        %v799 = vpack.c.b16 %v685, %v683
        %v800 = vpack.c.b16 %v686, %v684
        %v801 = vpack.c.b16 %v689, %v687
        %v802 = vpack.c.b16 %v690, %v688
        %v803 = vpack.c.b16 %v693, %v691
        %v804 = vpack.c.b16 %v694, %v692
        %v805 = vpack.c.b16 %v697, %v695
        %v806 = vpack.c.b16 %v698, %v696
        %v807 = vpack.c.b16 %v701, %v699
        %v808 = vpack.c.b16 %v702, %v700
        %v809 = vpack.c.b16 %v705, %v703
        %v810 = vpack.c.b16 %v706, %v704
        %v811 = vpack.c.b16 %v709, %v707
        %v812 = vpack.c.b16 %v710, %v708
        %v813 = vpack.c.b16 %v713, %v711
        %v814 = vpack.c.b16 %v714, %v712
        %v815 = vpack.c.b16 %v717, %v715
        %v816 = vpack.c.b16 %v718, %v716
        %v817 = vpack.c.b16 %v721, %v719
        %v818 = vpack.c.b16 %v722, %v720
        %v819 = vpack.c.b16 %v725, %v723
        %v820 = vpack.c.b16 %v726, %v724
        %v821 = vpack.c.b16 %v729, %v727
        %v822 = vpack.c.b16 %v730, %v728
        %v823 = vpack.c.b16 %v733, %v731
        %v824 = vpack.c.b16 %v734, %v732
        %v825 = vpack.c.b16 %v737, %v735
        %v826 = vpack.c.b16 %v738, %v736
        %v827 = vpack.c.b16 %v741, %v739
        %v828 = vpack.c.b16 %v742, %v740
        %v829 = vpack.c.b16 %v745, %v743
        %v830 = vpack.c.b16 %v746, %v744
        %v831 = vpack.c.b16 %v749, %v747
        %v832 = vpack.c.b16 %v750, %v748
        %v833 = vpack.c.b16 %v753, %v751
        %v834 = vpack.c.b16 %v754, %v752
        %v835 = vpack.c.b16 %v757, %v755
        %v836 = vpack.c.b16 %v758, %v756
        %v837 = vpack.c.b16 %v761, %v759
        %v838 = vpack.c.b16 %v762, %v760
        %v839 = vpack.c.b16 %v765, %v763
        %v840 = vpack.c.b16 %v766, %v764
        %v841 = vpack.c.b16 %v769, %v767
        %v842 = vpack.c.b16 %v770, %v768
        %v843 = vpack.c.b16 %v773, %v771
        %v844 = vpack.c.b16 %v774, %v772
        %v845 = vpack.c.b16 %v777, %v775
        %v846 = vpack.c.b16 %v778, %v776
        %v847 = vpack.c.b16 %v781, %v779
        %v848 = vpack.c.b16 %v782, %v780
        %v849 = vpack.c.b16 %v785, %v783
        %v850 = vpack.c.b16 %v786, %v784
        %915 = vmatprep.subr.bf16.mxu0 %v788
        %916 = vmatpush1.bf16.msra.mxu0 %v787
        %917 = vmatprep.subr.bf16.mxu0 %v790
        %918 = vmatpush1.bf16.msra.mxu0 %v789
        %919 = vmatprep.subr.bf16.mxu0 %v792
        %920 = vmatpush1.bf16.msra.mxu0 %v791
        %921 = vmatprep.subr.bf16.mxu0 %v794
        %922 = vmatpush1.bf16.msra.mxu0 %v793
        %923 = vmatprep.subr.bf16.mxu0 %v796
        %924 = vmatpush1.bf16.msra.mxu0 %v795
        %925 = vmatprep.subr.bf16.mxu0 %v798
        %926 = vmatpush1.bf16.msra.mxu0 %v797
        %927 = vmatprep.subr.bf16.mxu0 %v800
        %928 = vmatpush1.bf16.msra.mxu0 %v799
        %929 = vmatprep.subr.bf16.mxu0 %v802
        %930 = vmatpush1.bf16.msra.mxu0 %v801
        %931 = vmatprep.subr.bf16.mxu0 %v804
        %932 = vmatpush1.bf16.msra.mxu0 %v803
        %933 = vmatprep.subr.bf16.mxu0 %v806
        %934 = vmatpush1.bf16.msra.mxu0 %v805
        %935 = vmatprep.subr.bf16.mxu0 %v808
        %936 = vmatpush1.bf16.msra.mxu0 %v807
        %937 = vmatprep.subr.bf16.mxu0 %v810
        %938 = vmatpush1.bf16.msra.mxu0 %v809
        %939 = vmatprep.subr.bf16.mxu0 %v812
        %940 = vmatpush1.bf16.msra.mxu0 %v811
        %941 = vmatprep.subr.bf16.mxu0 %v814
        %942 = vmatpush1.bf16.msra.mxu0 %v813
        %943 = vmatprep.subr.bf16.mxu0 %v816
        %944 = vmatpush1.bf16.msra.mxu0 %v815
        %945 = vmatprep.subr.bf16.mxu0 %v818
        %946 = vmatpush1.bf16.msra.mxu0 %v817
        %947 = vmatprep.mubr.bf16.mxu0 %v532
        %948 = vmatmul.mubr.bf16.gmra.mrb[0].mxu0 %v531
        %v949 = vpop.f32.mrb[0].mxu0
        %v950 = vadd.f32 %v428, %v949
        %v951 = vpop.f32.mrb[0].mxu0
        %v952 = vadd.f32 %v432, %v951
        %v953 = vpop.f32.mrb[0].mxu0
        %v954 = vadd.f32 %v428, %v953
        %v955 = vpop.f32.mrb[0].mxu0
        %v956 = vadd.f32 %v432, %v955
        %957 = vmatprep.mubr.bf16.mxu0 %v536
        %958 = vmatmul.mubr.bf16.gmra.mrb[0].mxu0 %v535
        %v959 = vpop.f32.mrb[0].mxu0
        %v960 = vadd.f32 %v428, %v959
        %v961 = vpop.f32.mrb[0].mxu0
        %v962 = vadd.f32 %v432, %v961
        %v963 = vpop.f32.mrb[0].mxu0
        %v964 = vadd.f32 %v428, %v963
        %v965 = vpop.f32.mrb[0].mxu0
        %v966 = vadd.f32 %v432, %v965
        %967 = vmatprep.mubr.bf16.mxu0 %v540
        %968 = vmatmul.mubr.bf16.gmra.mrb[0].mxu0 %v539
        %v969 = vpop.f32.mrb[0].mxu0
        %v970 = vadd.f32 %v428, %v969
        %v971 = vpop.f32.mrb[0].mxu0
        %v972 = vadd.f32 %v432, %v971
        %v973 = vpop.f32.mrb[0].mxu0
        %v974 = vadd.f32 %v428, %v973
        %v975 = vpop.f32.mrb[0].mxu0
        %v976 = vadd.f32 %v432, %v975
        %977 = vmatprep.mubr.bf16.mxu0 %v544
        %978 = vmatmul.mubr.bf16.gmra.mrb[0].mxu0 %v543
        %v979 = vpop.f32.mrb[0].mxu0
        %v980 = vadd.f32 %v428, %v979
        %v981 = vpop.f32.mrb[0].mxu0
        %v982 = vadd.f32 %v432, %v981
        %v983 = vpop.f32.mrb[0].mxu0
        %v984 = vadd.f32 %v428, %v983
        %v985 = vpop.f32.mrb[0].mxu0
        %v986 = vadd.f32 %v432, %v985
        %987 = vmatprep.mubr.bf16.mxu0 %v548
        %988 = vmatmul.mubr.bf16.gmra.mrb[0].mxu0 %v547
        %v989 = vpop.f32.mrb[0].mxu0
        %v990 = vadd.f32 %v428, %v989
        %v991 = vpop.f32.mrb[0].mxu0
        %v992 = vadd.f32 %v432, %v991
        %v993 = vpop.f32.mrb[0].mxu0
        %v994 = vadd.f32 %v428, %v993
        %v995 = vpop.f32.mrb[0].mxu0
        %v996 = vadd.f32 %v432, %v995
        %997 = vmatprep.mubr.bf16.mxu0 %v552
        %998 = vmatmul.mubr.bf16.gmra.mrb[0].mxu0 %v551
        %v999 = vpop.f32.mrb[0].mxu0
        %v1000 = vadd.f32 %v428, %v999
        %v1001 = vpop.f32.mrb[0].mxu0
        %v1002 = vadd.f32 %v432, %v1001
        %v1003 = vpop.f32.mrb[0].mxu0
        %v1004 = vadd.f32 %v428, %v1003
        %v1005 = vpop.f32.mrb[0].mxu0
        %v1006 = vadd.f32 %v432, %v1005
        %1007 = vmatprep.mubr.bf16.mxu0 %v556
        %1008 = vmatmul.mubr.bf16.gmra.mrb[0].mxu0 %v555
        %v1009 = vpop.f32.mrb[0].mxu0
        %v1010 = vadd.f32 %v428, %v1009
        %v1011 = vpop.f32.mrb[0].mxu0
        %v1012 = vadd.f32 %v432, %v1011
        %v1013 = vpop.f32.mrb[0].mxu0
        %v1014 = vadd.f32 %v428, %v1013
        %v1015 = vpop.f32.mrb[0].mxu0
        %v1016 = vadd.f32 %v432, %v1015
        %1017 = vmatprep.mubr.bf16.mxu0 %v560
        %1018 = vmatmul.mubr.bf16.gmra.mrb[0].mxu0 %v559
        %v1019 = vpop.f32.mrb[0].mxu0
        %v1020 = vadd.f32 %v428, %v1019
        %v1021 = vpop.f32.mrb[0].mxu0
        %v1022 = vadd.f32 %v432, %v1021
        %v1023 = vpop.f32.mrb[0].mxu0
        %v1024 = vadd.f32 %v428, %v1023
        %v1025 = vpop.f32.mrb[0].mxu0
        %v1026 = vadd.f32 %v432, %v1025
        %1027 = vdwg.mxu0
        %1028 = vmatprep.subr.bf16.mxu0 %v820
        %1029 = vmatpush1.bf16.msra.mxu0 %v819
        %1030 = vmatprep.subr.bf16.mxu0 %v822
        %1031 = vmatpush1.bf16.msra.mxu0 %v821
        %1032 = vmatprep.subr.bf16.mxu0 %v824
        %1033 = vmatpush1.bf16.msra.mxu0 %v823
        %1034 = vmatprep.subr.bf16.mxu0 %v826
        %1035 = vmatpush1.bf16.msra.mxu0 %v825
        %1036 = vmatprep.subr.bf16.mxu0 %v828
        %1037 = vmatpush1.bf16.msra.mxu0 %v827
        %1038 = vmatprep.subr.bf16.mxu0 %v830
        %1039 = vmatpush1.bf16.msra.mxu0 %v829
        %1040 = vmatprep.subr.bf16.mxu0 %v832
        %1041 = vmatpush1.bf16.msra.mxu0 %v831
        %1042 = vmatprep.subr.bf16.mxu0 %v834
        %1043 = vmatpush1.bf16.msra.mxu0 %v833
        %1044 = vmatprep.subr.bf16.mxu0 %v836
        %1045 = vmatpush1.bf16.msra.mxu0 %v835
        %1046 = vmatprep.subr.bf16.mxu0 %v838
        %1047 = vmatpush1.bf16.msra.mxu0 %v837
        %1048 = vmatprep.subr.bf16.mxu0 %v840
        %1049 = vmatpush1.bf16.msra.mxu0 %v839
        %1050 = vmatprep.subr.bf16.mxu0 %v842
        %1051 = vmatpush1.bf16.msra.mxu0 %v841
        %1052 = vmatprep.subr.bf16.mxu0 %v844
        %1053 = vmatpush1.bf16.msra.mxu0 %v843
        %1054 = vmatprep.subr.bf16.mxu0 %v846
        %1055 = vmatpush1.bf16.msra.mxu0 %v845
        %1056 = vmatprep.subr.bf16.mxu0 %v848
        %1057 = vmatpush1.bf16.msra.mxu0 %v847
        %1058 = vmatprep.subr.bf16.mxu0 %v850
        %1059 = vmatpush1.bf16.msra.mxu0 %v849
        %1060 = vmatprep.mubr.bf16.mxu0 %v534
        %1061 = vmatmul.mubr.bf16.gmra.mrb[0].mxu0 %v533
        %v1062 = vpop.f32.mrb[0].mxu0
        %v1063 = vadd.f32 %v950, %v1062
        %v1064 = vpop.f32.mrb[0].mxu0
        %v1065 = vadd.f32 %v952, %v1064
        %v1066 = vpop.f32.mrb[0].mxu0
        %v1067 = vadd.f32 %v954, %v1066
        %v1068 = vpop.f32.mrb[0].mxu0
        %v1069 = vadd.f32 %v956, %v1068
        %1070 = vmatprep.mubr.bf16.mxu0 %v538
        %1071 = vmatmul.mubr.bf16.gmra.mrb[0].mxu0 %v537
        %v1072 = vpop.f32.mrb[0].mxu0
        %v1073 = vadd.f32 %v960, %v1072
        %v1074 = vpop.f32.mrb[0].mxu0
        %v1075 = vadd.f32 %v962, %v1074
        %v1076 = vpop.f32.mrb[0].mxu0
        %v1077 = vadd.f32 %v964, %v1076
        %v1078 = vpop.f32.mrb[0].mxu0
        %v1079 = vadd.f32 %v966, %v1078
        %1080 = vmatprep.mubr.bf16.mxu0 %v542
        %1081 = vmatmul.mubr.bf16.gmra.mrb[0].mxu0 %v541
        %v1082 = vpop.f32.mrb[0].mxu0
        %v1083 = vadd.f32 %v970, %v1082
        %v1084 = vpop.f32.mrb[0].mxu0
        %v1085 = vadd.f32 %v972, %v1084
        %v1086 = vpop.f32.mrb[0].mxu0
        %v1087 = vadd.f32 %v974, %v1086
        %v1088 = vpop.f32.mrb[0].mxu0
        %v1089 = vadd.f32 %v976, %v1088
        %1090 = vmatprep.mubr.bf16.mxu0 %v546
        %1091 = vmatmul.mubr.bf16.gmra.mrb[0].mxu0 %v545
        %v1092 = vpop.f32.mrb[0].mxu0
        %v1093 = vadd.f32 %v980, %v1092
        %v1094 = vpop.f32.mrb[0].mxu0
        %v1095 = vadd.f32 %v982, %v1094
        %v1096 = vpop.f32.mrb[0].mxu0
        %v1097 = vadd.f32 %v984, %v1096
        %v1098 = vpop.f32.mrb[0].mxu0
        %v1099 = vadd.f32 %v986, %v1098
        %1100 = vmatprep.mubr.bf16.mxu0 %v550
        %1101 = vmatmul.mubr.bf16.gmra.mrb[0].mxu0 %v549
        %v1102 = vpop.f32.mrb[0].mxu0
        %v1103 = vadd.f32 %v990, %v1102
        %v1104 = vpop.f32.mrb[0].mxu0
        %v1105 = vadd.f32 %v992, %v1104
        %v1106 = vpop.f32.mrb[0].mxu0
        %v1107 = vadd.f32 %v994, %v1106
        %v1108 = vpop.f32.mrb[0].mxu0
        %v1109 = vadd.f32 %v996, %v1108
        %1110 = vmatprep.mubr.bf16.mxu0 %v554
        %1111 = vmatmul.mubr.bf16.gmra.mrb[0].mxu0 %v553
        %v1112 = vpop.f32.mrb[0].mxu0
        %v1113 = vadd.f32 %v1000, %v1112
        %v1114 = vpop.f32.mrb[0].mxu0
        %v1115 = vadd.f32 %v1002, %v1114
        %v1116 = vpop.f32.mrb[0].mxu0
        %v1117 = vadd.f32 %v1004, %v1116
        %v1118 = vpop.f32.mrb[0].mxu0
        %v1119 = vadd.f32 %v1006, %v1118
        %1120 = vmatprep.mubr.bf16.mxu0 %v558
        %1121 = vmatmul.mubr.bf16.gmra.mrb[0].mxu0 %v557
        %v1122 = vpop.f32.mrb[0].mxu0
        %v1123 = vadd.f32 %v1010, %v1122
        %v1124 = vpop.f32.mrb[0].mxu0
        %v1125 = vadd.f32 %v1012, %v1124
        %v1126 = vpop.f32.mrb[0].mxu0
        %v1127 = vadd.f32 %v1014, %v1126
        %v1128 = vpop.f32.mrb[0].mxu0
        %v1129 = vadd.f32 %v1016, %v1128
        %1130 = vmatprep.mubr.bf16.mxu0 %v562
        %1131 = vmatmul.mubr.bf16.gmra.mrb[0].mxu0 %v561
        %v1132 = vpop.f32.mrb[0].mxu0
        %v1133 = vadd.f32 %v1020, %v1132
        %v1134 = vpop.f32.mrb[0].mxu0
        %v1135 = vadd.f32 %v1022, %v1134
        %v1136 = vpop.f32.mrb[0].mxu0
        %v1137 = vadd.f32 %v1024, %v1136
        %v1138 = vpop.f32.mrb[0].mxu0
        %v1139 = vadd.f32 %v1026, %v1138
        %1140 = vdwg.mxu0
        %v1141 = vld [vmem:[%s290] sm:$0xff]
        %v1142 = vld [vmem:[%s290 + $0x8] sm:$0xff]
        %v1143 = vld [vmem:[%s290 + $0x10] sm:$0xff]
        %v1144 = vld [vmem:[%s290 + $0x18] sm:$0xff]
        %v1145 = vld [vmem:[%s290 + $0x20] sm:$0xff]
        %v1146 = vld [vmem:[%s290 + $0x28] sm:$0xff]
        %v1147 = vld [vmem:[%s290 + $0x30] sm:$0xff]
        %v1148 = vld [vmem:[%s290 + $0x38] sm:$0xff]
        %v1149 = vld [vmem:[%s290 + $0x40] sm:$0xff]
        %v1150 = vld [vmem:[%s290 + $0x48] sm:$0xff]
        %v1151 = vld [vmem:[%s290 + $0x50] sm:$0xff]
        %v1152 = vld [vmem:[%s290 + $0x58] sm:$0xff]
        %v1153 = vld [vmem:[%s290 + $0x60] sm:$0xff]
        %v1154 = vld [vmem:[%s290 + $0x68] sm:$0xff]
        %v1155 = vld [vmem:[%s290 + $0x70] sm:$0xff]
        %v1156 = vld [vmem:[%s290 + $0x78] sm:$0xff]
        %v1157 = vld [vmem:[%s290 + $0x80] sm:$0xff]
        %v1158 = vld [vmem:[%s290 + $0x88] sm:$0xff]
        %v1159 = vld [vmem:[%s290 + $0x90] sm:$0xff]
        %v1160 = vld [vmem:[%s290 + $0x98] sm:$0xff]
        %v1161 = vld [vmem:[%s290 + $0xa0] sm:$0xff]
        %v1162 = vld [vmem:[%s290 + $0xa8] sm:$0xff]
        %v1163 = vld [vmem:[%s290 + $0xb0] sm:$0xff]
        %v1164 = vld [vmem:[%s290 + $0xb8] sm:$0xff]
        %v1165 = vld [vmem:[%s290 + $0xc0] sm:$0xff]
        %v1166 = vld [vmem:[%s290 + $0xc8] sm:$0xff]
        %v1167 = vld [vmem:[%s290 + $0xd0] sm:$0xff]
        %v1168 = vld [vmem:[%s290 + $0xd8] sm:$0xff]
        %v1169 = vld [vmem:[%s290 + $0xe0] sm:$0xff]
        %v1170 = vld [vmem:[%s290 + $0xe8] sm:$0xff]
        %v1171 = vld [vmem:[%s290 + $0xf0] sm:$0xff]
        %v1172 = vld [vmem:[%s290 + $0xf8] sm:$0xff]
        %v1173 = vadd.f32 %v1063, %v1141
        %v1174 = vadd.f32 %v1065, %v1142
        %v1175 = vadd.f32 %v1067, %v1143
        %v1176 = vadd.f32 %v1069, %v1144
        %v1177 = vadd.f32 %v1073, %v1145
        %v1178 = vadd.f32 %v1075, %v1146
        %v1179 = vadd.f32 %v1077, %v1147
        %v1180 = vadd.f32 %v1079, %v1148
        %v1181 = vadd.f32 %v1083, %v1149
        %v1182 = vadd.f32 %v1085, %v1150
        %v1183 = vadd.f32 %v1087, %v1151
        %v1184 = vadd.f32 %v1089, %v1152
        %v1185 = vadd.f32 %v1093, %v1153
        %v1186 = vadd.f32 %v1095, %v1154
        %v1187 = vadd.f32 %v1097, %v1155
        %v1188 = vadd.f32 %v1099, %v1156
        %v1189 = vadd.f32 %v1103, %v1157
        %v1190 = vadd.f32 %v1105, %v1158
        %v1191 = vadd.f32 %v1107, %v1159
        %v1192 = vadd.f32 %v1109, %v1160
        %v1193 = vadd.f32 %v1113, %v1161
        %v1194 = vadd.f32 %v1115, %v1162
        %v1195 = vadd.f32 %v1117, %v1163
        %v1196 = vadd.f32 %v1119, %v1164
        %v1197 = vadd.f32 %v1123, %v1165
        %v1198 = vadd.f32 %v1125, %v1166
        %v1199 = vadd.f32 %v1127, %v1167
        %v1200 = vadd.f32 %v1129, %v1168
        %v1201 = vadd.f32 %v1133, %v1169
        %v1202 = vadd.f32 %v1135, %v1170
        %v1203 = vadd.f32 %v1137, %v1171
        %v1204 = vadd.f32 %v1139, %v1172
        %v1205 = vadd.f32 %v1173, %v1174
        %1206 = vadd.xlane.f32.xlu0 %v1205
        %v1207 = vpop.xlane.xlu0 %1206
        %v1208 = vadd.f32 %v1175, %v1176
        %1209 = vadd.xlane.f32.xlu0 %v1208
        %v1210 = vpop.xlane.xlu0 %1209
        %v1211 = vadd.f32 %v1177, %v1178
        %1212 = vadd.xlane.f32.xlu0 %v1211
        %v1213 = vpop.xlane.xlu0 %1212
        %v1214 = vadd.f32 %v1179, %v1180
        %1215 = vadd.xlane.f32.xlu0 %v1214
        %v1216 = vpop.xlane.xlu0 %1215
        %v1217 = vadd.f32 %v1181, %v1182
        %1218 = vadd.xlane.f32.xlu0 %v1217
        %v1219 = vpop.xlane.xlu0 %1218
        %v1220 = vadd.f32 %v1183, %v1184
        %1221 = vadd.xlane.f32.xlu0 %v1220
        %v1222 = vpop.xlane.xlu0 %1221
        %v1223 = vadd.f32 %v1185, %v1186
        %1224 = vadd.xlane.f32.xlu0 %v1223
        %v1225 = vpop.xlane.xlu0 %1224
        %v1226 = vadd.f32 %v1187, %v1188
        %1227 = vadd.xlane.f32.xlu0 %v1226
        %v1228 = vpop.xlane.xlu0 %1227
        %v1229 = vadd.f32 %v1189, %v1190
        %1230 = vadd.xlane.f32.xlu0 %v1229
        %v1231 = vpop.xlane.xlu0 %1230
        %v1232 = vadd.f32 %v1191, %v1192
        %1233 = vadd.xlane.f32.xlu0 %v1232
        %v1234 = vpop.xlane.xlu0 %1233
        %v1235 = vadd.f32 %v1193, %v1194
        %1236 = vadd.xlane.f32.xlu0 %v1235
        %v1237 = vpop.xlane.xlu0 %1236
        %v1238 = vadd.f32 %v1195, %v1196
        %1239 = vadd.xlane.f32.xlu0 %v1238
        %v1240 = vpop.xlane.xlu0 %1239
        %v1241 = vadd.f32 %v1197, %v1198
        %1242 = vadd.xlane.f32.xlu0 %v1241
        %v1243 = vpop.xlane.xlu0 %1242
        %v1244 = vadd.f32 %v1199, %v1200
        %1245 = vadd.xlane.f32.xlu0 %v1244
        %v1246 = vpop.xlane.xlu0 %1245
        %v1247 = vadd.f32 %v1201, %v1202
        %1248 = vadd.xlane.f32.xlu0 %v1247
        %v1249 = vpop.xlane.xlu0 %1248
        %v1250 = vadd.f32 %v1203, %v1204
        %1251 = vadd.xlane.f32.xlu0 %v1250
        %v1252 = vpop.xlane.xlu0 %1251
        %v1253 = vmul.f32 %v1207, 0.00390625
        %v1254 = vmul.f32 %v1210, 0.00390625
        %v1255 = vmul.f32 %v1213, 0.00390625
        %v1256 = vmul.f32 %v1216, 0.00390625
        %v1257 = vmul.f32 %v1219, 0.00390625
        %v1258 = vmul.f32 %v1222, 0.00390625
        %v1259 = vmul.f32 %v1225, 0.00390625
        %v1260 = vmul.f32 %v1228, 0.00390625
        %v1261 = vmul.f32 %v1231, 0.00390625
        %v1262 = vmul.f32 %v1234, 0.00390625
        %v1263 = vmul.f32 %v1237, 0.00390625
        %v1264 = vmul.f32 %v1240, 0.00390625
        %v1265 = vmul.f32 %v1243, 0.00390625
        %v1266 = vmul.f32 %v1246, 0.00390625
        %v1267 = vmul.f32 %v1249, 0.00390625
        %v1268 = vmul.f32 %v1252, 0.00390625
        %v1269 = vsub.f32 %v1173, %v1253
        %v1270 = vsub.f32 %v1174, %v1253
        %v1271 = vsub.f32 %v1175, %v1254
        %v1272 = vsub.f32 %v1176, %v1254
        %v1273 = vsub.f32 %v1177, %v1255
        %v1274 = vsub.f32 %v1178, %v1255
        %v1275 = vsub.f32 %v1179, %v1256
        %v1276 = vsub.f32 %v1180, %v1256
        %v1277 = vsub.f32 %v1181, %v1257
        %v1278 = vsub.f32 %v1182, %v1257
        %v1279 = vsub.f32 %v1183, %v1258
        %v1280 = vsub.f32 %v1184, %v1258
        %v1281 = vsub.f32 %v1185, %v1259
        %v1282 = vsub.f32 %v1186, %v1259
        %v1283 = vsub.f32 %v1187, %v1260
        %v1284 = vsub.f32 %v1188, %v1260
        %v1285 = vsub.f32 %v1189, %v1261
        %v1286 = vsub.f32 %v1190, %v1261
        %v1287 = vsub.f32 %v1191, %v1262
        %v1288 = vsub.f32 %v1192, %v1262
        %v1289 = vsub.f32 %v1193, %v1263
        %v1290 = vsub.f32 %v1194, %v1263
        %v1291 = vsub.f32 %v1195, %v1264
        %v1292 = vsub.f32 %v1196, %v1264
        %v1293 = vsub.f32 %v1197, %v1265
        %v1294 = vsub.f32 %v1198, %v1265
        %v1295 = vsub.f32 %v1199, %v1266
        %v1296 = vsub.f32 %v1200, %v1266
        %v1297 = vsub.f32 %v1201, %v1267
        %v1298 = vsub.f32 %v1202, %v1267
        %v1299 = vsub.f32 %v1203, %v1268
        %v1300 = vsub.f32 %v1204, %v1268
        %v1301 = vmul.f32 %v1269, %v1269
        %v1302 = vmul.f32 %v1270, %v1270
        %v1303 = vmul.f32 %v1271, %v1271
        %v1304 = vmul.f32 %v1272, %v1272
        %v1305 = vmul.f32 %v1273, %v1273
        %v1306 = vmul.f32 %v1274, %v1274
        %v1307 = vmul.f32 %v1275, %v1275
        %v1308 = vmul.f32 %v1276, %v1276
        %v1309 = vmul.f32 %v1277, %v1277
        %v1310 = vmul.f32 %v1278, %v1278
        %v1311 = vmul.f32 %v1279, %v1279
        %v1312 = vmul.f32 %v1280, %v1280
        %v1313 = vmul.f32 %v1281, %v1281
        %v1314 = vmul.f32 %v1282, %v1282
        %v1315 = vmul.f32 %v1283, %v1283
        %v1316 = vmul.f32 %v1284, %v1284
        %v1317 = vmul.f32 %v1285, %v1285
        %v1318 = vmul.f32 %v1286, %v1286
        %v1319 = vmul.f32 %v1287, %v1287
        %v1320 = vmul.f32 %v1288, %v1288
        %v1321 = vmul.f32 %v1289, %v1289
        %v1322 = vmul.f32 %v1290, %v1290
        %v1323 = vmul.f32 %v1291, %v1291
        %v1324 = vmul.f32 %v1292, %v1292
        %v1325 = vmul.f32 %v1293, %v1293
        %v1326 = vmul.f32 %v1294, %v1294
        %v1327 = vmul.f32 %v1295, %v1295
        %v1328 = vmul.f32 %v1296, %v1296
        %v1329 = vmul.f32 %v1297, %v1297
        %v1330 = vmul.f32 %v1298, %v1298
        %v1331 = vmul.f32 %v1299, %v1299
        %v1332 = vmul.f32 %v1300, %v1300
        %v1333 = vadd.f32 %v1301, %v1302
        %1334 = vadd.xlane.f32.xlu0 %v1333
        %v1335 = vpop.xlane.xlu0 %1334
        %v1336 = vadd.f32 %v1303, %v1304
        %1337 = vadd.xlane.f32.xlu0 %v1336
        %v1338 = vpop.xlane.xlu0 %1337
        %v1339 = vadd.f32 %v1305, %v1306
        %1340 = vadd.xlane.f32.xlu0 %v1339
        %v1341 = vpop.xlane.xlu0 %1340
        %v1342 = vadd.f32 %v1307, %v1308
        %1343 = vadd.xlane.f32.xlu0 %v1342
        %v1344 = vpop.xlane.xlu0 %1343
        %v1345 = vadd.f32 %v1309, %v1310
        %1346 = vadd.xlane.f32.xlu0 %v1345
        %v1347 = vpop.xlane.xlu0 %1346
        %v1348 = vadd.f32 %v1311, %v1312
        %1349 = vadd.xlane.f32.xlu0 %v1348
        %v1350 = vpop.xlane.xlu0 %1349
        %v1351 = vadd.f32 %v1313, %v1314
        %1352 = vadd.xlane.f32.xlu0 %v1351
        %v1353 = vpop.xlane.xlu0 %1352
        %v1354 = vadd.f32 %v1315, %v1316
        %1355 = vadd.xlane.f32.xlu0 %v1354
        %v1356 = vpop.xlane.xlu0 %1355
        %v1357 = vadd.f32 %v1317, %v1318
        %1358 = vadd.xlane.f32.xlu0 %v1357
        %v1359 = vpop.xlane.xlu0 %1358
        %v1360 = vadd.f32 %v1319, %v1320
        %1361 = vadd.xlane.f32.xlu0 %v1360
        %v1362 = vpop.xlane.xlu0 %1361
        %v1363 = vadd.f32 %v1321, %v1322
        %1364 = vadd.xlane.f32.xlu0 %v1363
        %v1365 = vpop.xlane.xlu0 %1364
        %v1366 = vadd.f32 %v1323, %v1324
        %1367 = vadd.xlane.f32.xlu0 %v1366
        %v1368 = vpop.xlane.xlu0 %1367
        %v1369 = vadd.f32 %v1325, %v1326
        %1370 = vadd.xlane.f32.xlu0 %v1369
        %v1371 = vpop.xlane.xlu0 %1370
        %v1372 = vadd.f32 %v1327, %v1328
        %1373 = vadd.xlane.f32.xlu0 %v1372
        %v1374 = vpop.xlane.xlu0 %1373
        %v1375 = vadd.f32 %v1329, %v1330
        %1376 = vadd.xlane.f32.xlu0 %v1375
        %v1377 = vpop.xlane.xlu0 %1376
        %v1378 = vadd.f32 %v1331, %v1332
        %1379 = vadd.xlane.f32.xlu0 %v1378
        %v1380 = vpop.xlane.xlu0 %1379
        %v1381 = vmul.f32 %v1335, 0.00390625
        %v1382 = vmul.f32 %v1338, 0.00390625
        %v1383 = vmul.f32 %v1341, 0.00390625
        %v1384 = vmul.f32 %v1344, 0.00390625
        %v1385 = vmul.f32 %v1347, 0.00390625
        %v1386 = vmul.f32 %v1350, 0.00390625
        %v1387 = vmul.f32 %v1353, 0.00390625
        %v1388 = vmul.f32 %v1356, 0.00390625
        %v1389 = vmul.f32 %v1359, 0.00390625
        %v1390 = vmul.f32 %v1362, 0.00390625
        %v1391 = vmul.f32 %v1365, 0.00390625
        %v1392 = vmul.f32 %v1368, 0.00390625
        %v1393 = vmul.f32 %v1371, 0.00390625
        %v1394 = vmul.f32 %v1374, 0.00390625
        %v1395 = vmul.f32 %v1377, 0.00390625
        %v1396 = vmul.f32 %v1380, 0.00390625
        %v1397 = vadd.f32 %v1381, 1e-12
        %v1398 = vadd.f32 %v1382, 1e-12
        %v1399 = vadd.f32 %v1383, 1e-12
        %v1400 = vadd.f32 %v1384, 1e-12
        %v1401 = vadd.f32 %v1385, 1e-12
        %v1402 = vadd.f32 %v1386, 1e-12
        %v1403 = vadd.f32 %v1387, 1e-12
        %v1404 = vadd.f32 %v1388, 1e-12
        %v1405 = vadd.f32 %v1389, 1e-12
        %v1406 = vadd.f32 %v1390, 1e-12
        %v1407 = vadd.f32 %v1391, 1e-12
        %v1408 = vadd.f32 %v1392, 1e-12
        %v1409 = vadd.f32 %v1393, 1e-12
        %v1410 = vadd.f32 %v1394, 1e-12
        %v1411 = vadd.f32 %v1395, 1e-12
        %v1412 = vadd.f32 %v1396, 1e-12
        %v1413 = vrsqrt.pop %v1397
        %v1414 = vrsqrt.pop %v1398
        %v1415 = vrsqrt.pop %v1399
        %v1416 = vrsqrt.pop %v1400
        %v1417 = vrsqrt.pop %v1401
        %v1418 = vrsqrt.pop %v1402
        %v1419 = vrsqrt.pop %v1403
        %v1420 = vrsqrt.pop %v1404
        %v1421 = vrsqrt.pop %v1405
        %v1422 = vrsqrt.pop %v1406
        %v1423 = vrsqrt.pop %v1407
        %v1424 = vrsqrt.pop %v1408
        %v1425 = vrsqrt.pop %v1409
        %v1426 = vrsqrt.pop %v1410
        %v1427 = vrsqrt.pop %v1411
        %v1428 = vrsqrt.pop %v1412
        %v1429 = vmul.f32 %v1269, %v1413
        %v1430 = vmul.f32 %v1270, %v1413
        %v1431 = vmul.f32 %v1271, %v1414
        %v1432 = vmul.f32 %v1272, %v1414
        %v1433 = vmul.f32 %v1273, %v1415
        %v1434 = vmul.f32 %v1274, %v1415
        %v1435 = vmul.f32 %v1275, %v1416
        %v1436 = vmul.f32 %v1276, %v1416
        %v1437 = vmul.f32 %v1277, %v1417
        %v1438 = vmul.f32 %v1278, %v1417
        %v1439 = vmul.f32 %v1279, %v1418
        %v1440 = vmul.f32 %v1280, %v1418
        %v1441 = vmul.f32 %v1281, %v1419
        %v1442 = vmul.f32 %v1282, %v1419
        %v1443 = vmul.f32 %v1283, %v1420
        %v1444 = vmul.f32 %v1284, %v1420
        %v1445 = vmul.f32 %v1285, %v1421
        %v1446 = vmul.f32 %v1286, %v1421
        %v1447 = vmul.f32 %v1287, %v1422
        %v1448 = vmul.f32 %v1288, %v1422
        %v1449 = vmul.f32 %v1289, %v1423
        %v1450 = vmul.f32 %v1290, %v1423
        %v1451 = vmul.f32 %v1291, %v1424
        %v1452 = vmul.f32 %v1292, %v1424
        %v1453 = vmul.f32 %v1293, %v1425
        %v1454 = vmul.f32 %v1294, %v1425
        %v1455 = vmul.f32 %v1295, %v1426
        %v1456 = vmul.f32 %v1296, %v1426
        %v1457 = vmul.f32 %v1297, %v1427
        %v1458 = vmul.f32 %v1298, %v1427
        %v1459 = vmul.f32 %v1299, %v1428
        %v1460 = vmul.f32 %v1300, %v1428
        %v1461 = vld [vmem:[%s4] sm:$0x3]
        %v1463 = vlaneseq
        %v1464 = vshrl.u32 %v1463, 7
        %v1465 = vsub.s32 0, %v1464
        %v1466 = vrot.slane %v1461, %v1465
        %v1467 = vlaneseq
        %v1468 = vshrl.u32 %v1467, 7
        %v1469 = vsub.s32 1, %v1468
        %v1470 = vrot.slane %v1461, %v1469
        %v1473 = vmul.f32 %v1429, %v1466
        %v1474 = vmul.f32 %v1430, %v1470
        %v1475 = vmul.f32 %v1431, %v1466
        %v1476 = vmul.f32 %v1432, %v1470
        %v1477 = vmul.f32 %v1433, %v1466
        %v1478 = vmul.f32 %v1434, %v1470
        %v1479 = vmul.f32 %v1435, %v1466
        %v1480 = vmul.f32 %v1436, %v1470
        %v1481 = vmul.f32 %v1437, %v1466
        %v1482 = vmul.f32 %v1438, %v1470
        %v1483 = vmul.f32 %v1439, %v1466
        %v1484 = vmul.f32 %v1440, %v1470
        %v1485 = vmul.f32 %v1441, %v1466
        %v1486 = vmul.f32 %v1442, %v1470
        %v1487 = vmul.f32 %v1443, %v1466
        %v1488 = vmul.f32 %v1444, %v1470
        %v1489 = vmul.f32 %v1445, %v1466
        %v1490 = vmul.f32 %v1446, %v1470
        %v1491 = vmul.f32 %v1447, %v1466
        %v1492 = vmul.f32 %v1448, %v1470
        %v1493 = vmul.f32 %v1449, %v1466
        %v1494 = vmul.f32 %v1450, %v1470
        %v1495 = vmul.f32 %v1451, %v1466
        %v1496 = vmul.f32 %v1452, %v1470
        %v1497 = vmul.f32 %v1453, %v1466
        %v1498 = vmul.f32 %v1454, %v1470
        %v1499 = vmul.f32 %v1455, %v1466
        %v1500 = vmul.f32 %v1456, %v1470
        %v1501 = vmul.f32 %v1457, %v1466
        %v1502 = vmul.f32 %v1458, %v1470
        %v1503 = vmul.f32 %v1459, %v1466
        %v1504 = vmul.f32 %v1460, %v1470
        %v1505 = vld [vmem:[%s5] sm:$0x3]
        %v1507 = vlaneseq
        %v1508 = vshrl.u32 %v1507, 7
        %v1509 = vsub.s32 0, %v1508
        %v1510 = vrot.slane %v1505, %v1509
        %v1511 = vlaneseq
        %v1512 = vshrl.u32 %v1511, 7
        %v1513 = vsub.s32 1, %v1512
        %v1514 = vrot.slane %v1505, %v1513
        %v1517 = vadd.f32 %v1473, %v1510
        %v1518 = vadd.f32 %v1474, %v1514
        %v1519 = vadd.f32 %v1475, %v1510
        %v1520 = vadd.f32 %v1476, %v1514
        %v1521 = vadd.f32 %v1477, %v1510
        %v1522 = vadd.f32 %v1478, %v1514
        %v1523 = vadd.f32 %v1479, %v1510
        %v1524 = vadd.f32 %v1480, %v1514
        %v1525 = vadd.f32 %v1481, %v1510
        %v1526 = vadd.f32 %v1482, %v1514
        %v1527 = vadd.f32 %v1483, %v1510
        %v1528 = vadd.f32 %v1484, %v1514
        %v1529 = vadd.f32 %v1485, %v1510
        %v1530 = vadd.f32 %v1486, %v1514
        %v1531 = vadd.f32 %v1487, %v1510
        %v1532 = vadd.f32 %v1488, %v1514
        %v1533 = vadd.f32 %v1489, %v1510
        %v1534 = vadd.f32 %v1490, %v1514
        %v1535 = vadd.f32 %v1491, %v1510
        %v1536 = vadd.f32 %v1492, %v1514
        %v1537 = vadd.f32 %v1493, %v1510
        %v1538 = vadd.f32 %v1494, %v1514
        %v1539 = vadd.f32 %v1495, %v1510
        %v1540 = vadd.f32 %v1496, %v1514
        %v1541 = vadd.f32 %v1497, %v1510
        %v1542 = vadd.f32 %v1498, %v1514
        %v1543 = vadd.f32 %v1499, %v1510
        %v1544 = vadd.f32 %v1500, %v1514
        %v1545 = vadd.f32 %v1501, %v1510
        %v1546 = vadd.f32 %v1502, %v1514
        %v1547 = vadd.f32 %v1503, %v1510
        %v1548 = vadd.f32 %v1504, %v1514
        %v1549 = vpack.c.bf16 %v1519, %v1517
        %v1550 = vpack.c.bf16 %v1520, %v1518
        %v1551 = vpack.c.bf16 %v1523, %v1521
        %v1552 = vpack.c.bf16 %v1524, %v1522
        %v1553 = vpack.c.bf16 %v1527, %v1525
        %v1554 = vpack.c.bf16 %v1528, %v1526
        %v1555 = vpack.c.bf16 %v1531, %v1529
        %v1556 = vpack.c.bf16 %v1532, %v1530
        %v1557 = vpack.c.bf16 %v1535, %v1533
        %v1558 = vpack.c.bf16 %v1536, %v1534
        %v1559 = vpack.c.bf16 %v1539, %v1537
        %v1560 = vpack.c.bf16 %v1540, %v1538
        %v1561 = vpack.c.bf16 %v1543, %v1541
        %v1562 = vpack.c.bf16 %v1544, %v1542
        %v1563 = vpack.c.bf16 %v1547, %v1545
        %v1564 = vpack.c.bf16 %v1548, %v1546
        %v1581 = vunpack.c.l.b16 %v1549
        %v1582 = vunpack.c.l.b16 %v1550
        %v1583 = vunpack.c.h.b16 %v1549
        %v1584 = vunpack.c.h.b16 %v1550
        %v1585 = vunpack.c.l.b16 %v1551
        %v1586 = vunpack.c.l.b16 %v1552
        %v1587 = vunpack.c.h.b16 %v1551
        %v1588 = vunpack.c.h.b16 %v1552
        %v1589 = vunpack.c.l.b16 %v1553
        %v1590 = vunpack.c.l.b16 %v1554
        %v1591 = vunpack.c.h.b16 %v1553
        %v1592 = vunpack.c.h.b16 %v1554
        %v1593 = vunpack.c.l.b16 %v1555
        %v1594 = vunpack.c.l.b16 %v1556
        %v1595 = vunpack.c.h.b16 %v1555
        %v1596 = vunpack.c.h.b16 %v1556
        %v1597 = vunpack.c.l.b16 %v1557
        %v1598 = vunpack.c.l.b16 %v1558
        %v1599 = vunpack.c.h.b16 %v1557
        %v1600 = vunpack.c.h.b16 %v1558
        %v1601 = vunpack.c.l.b16 %v1559
        %v1602 = vunpack.c.l.b16 %v1560
        %v1603 = vunpack.c.h.b16 %v1559
        %v1604 = vunpack.c.h.b16 %v1560
        %v1605 = vunpack.c.l.b16 %v1561
        %v1606 = vunpack.c.l.b16 %v1562
        %v1607 = vunpack.c.h.b16 %v1561
        %v1608 = vunpack.c.h.b16 %v1562
        %v1609 = vunpack.c.l.b16 %v1563
        %v1610 = vunpack.c.l.b16 %v1564
        %v1611 = vunpack.c.h.b16 %v1563
        %v1612 = vunpack.c.h.b16 %v1564
        %v1613 = vpack.c.b16 %v1582, %v1581
        %v1614 = vpack.c.b16 %v1584, %v1583
        %v1615 = vpack.c.b16 %v1586, %v1585
        %v1616 = vpack.c.b16 %v1588, %v1587
        %v1617 = vpack.c.b16 %v1590, %v1589
        %v1618 = vpack.c.b16 %v1592, %v1591
        %v1619 = vpack.c.b16 %v1594, %v1593
        %v1620 = vpack.c.b16 %v1596, %v1595
        %v1621 = vpack.c.b16 %v1598, %v1597
        %v1622 = vpack.c.b16 %v1600, %v1599
        %v1623 = vpack.c.b16 %v1602, %v1601
        %v1624 = vpack.c.b16 %v1604, %v1603
        %v1625 = vpack.c.b16 %v1606, %v1605
        %v1626 = vpack.c.b16 %v1608, %v1607
        %v1627 = vpack.c.b16 %v1610, %v1609
        %v1628 = vpack.c.b16 %v1612, %v1611
        %1645 = vst [vmem:[%s323] sm:$0xff] %v1613
        %1646 = vst [vmem:[%s323 + $0x8] sm:$0xff] %v1614
        %1647 = vst [vmem:[%s323 + $0x10] sm:$0xff] %v1615
        %1648 = vst [vmem:[%s323 + $0x18] sm:$0xff] %v1616
        %1649 = vst [vmem:[%s323 + $0x20] sm:$0xff] %v1617
        %1650 = vst [vmem:[%s323 + $0x28] sm:$0xff] %v1618
        %1651 = vst [vmem:[%s323 + $0x30] sm:$0xff] %v1619
        %1652 = vst [vmem:[%s323 + $0x38] sm:$0xff] %v1620
        %1653 = vst [vmem:[%s323 + $0x40] sm:$0xff] %v1621
        %1654 = vst [vmem:[%s323 + $0x48] sm:$0xff] %v1622
        %1655 = vst [vmem:[%s323 + $0x50] sm:$0xff] %v1623
        %1656 = vst [vmem:[%s323 + $0x58] sm:$0xff] %v1624
        %1657 = vst [vmem:[%s323 + $0x60] sm:$0xff] %v1625
        %1658 = vst [vmem:[%s323 + $0x68] sm:$0xff] %v1626
        %1659 = vst [vmem:[%s323 + $0x70] sm:$0xff] %v1627
        %1660 = vst [vmem:[%s323 + $0x78] sm:$0xff] %v1628
        %s1661 = sand.u32 %s168, 1
        %s1662 = scalar_lea.sflag [#allocation4], %s1661
        %s1663 = sand.u32 %s168, 1
        %s1664 = smul.addr %s1663, 128
        %s1665 = scalar_lea.vmem [#allocation8], %s1664
        // Predicated region
        $region57: #{tpu_custom_call.1} parent=43 // pred_check
          %p1666 = pneg %p178
        $region58: #{tpu_custom_call.1} parent=43 // pred_check_branch
          %1668 = sbr.rel (%p1666) target = $region60
        $region59: #{tpu_custom_call.1} parent=43 // pred_region
          %s1669 = smul.u32 16, %s24
          %s1671 = ssub.s32 2048, 2048
          %1672 = vsyncadd %s1662, %s1671
          %s1673 = smul.addr %s1669, 2
          %s1674 = smul.addr %s1673, 64
          %s1675 = scalar_lea.hbm %s6, %s1674
          %s1676 = sshll.u32 %s1665, 4
          %s1677 = int_to_ptr.vmem [resolvable:$true] %s1676
          %1682 = dma.vmem_to_hbm [thread:$0]  %s1677, 2048, %s1675, %s1662, 128, 128, 8
        $region60: #{tpu_custom_call.1} parent=43 // pred_fallthru
          _
      $region44: #{tpu_custom_call.1} parent=5 // pred_fallthru
        _
      %p1683 = scmp.le.s32.totalorder 2, %s19
      // Predicated region
      $region61: #{tpu_custom_call.1} parent=5 // pred_check
        %p1684 = pneg %p1683
      $region62: #{tpu_custom_call.1} parent=5 // pred_check_branch
        %1686 = sbr.rel (%p1684) target = $region64
      $region63: #{tpu_custom_call.1} parent=5 // pred_region
        %s1687 = ssub.s32 %s19, 2
        // Predicated region
        $region65: #{tpu_custom_call.1} parent=63 // pred_check
          %p1688 = pneg %p184
        $region66: #{tpu_custom_call.1} parent=63 // pred_check_branch
          %1690 = sbr.rel (%p1688) target = $region68
        $region67: #{tpu_custom_call.1} parent=63 // pred_region
          %s1691 = sand.u32 %s169, 1
          %s1692 = scalar_lea.sflag [#allocation4], %s1691
          %s1693 = sand.u32 %s169, 1
          %s1694 = smul.addr %s1693, 128
          %s1695 = scalar_lea.vmem [#allocation8], %s1694
          %1696 = dma.done %s1692, 2048
        $region68: #{tpu_custom_call.1} parent=63 // pred_fallthru
          _
      $region64: #{tpu_custom_call.1} parent=5 // pred_fallthru
        _
    $region6: #{tpu_custom_call.1} parent=1 // loop_footer
      %s23 = sadd.s32 1, %s19
    $region7: #{tpu_custom_call.1} parent=1 // loop_footer_branch
      %18 = sbr.rel target = $region3
    $region8: #{tpu_custom_call.1} parent=1 // loop_exit
      _
    %1697 = vsyncpa [#allocation3], 1
    %s1698 = scalar_lea.sflag [#allocation3], 1
    %1699 = vsyncpa %s1698, 1
    %1700 = vsyncpa [#allocation6], 1
    %1701 = vsyncpa [#allocation4], 1
    %s1702 = scalar_lea.sflag [#allocation4], 1
    %1703 = vsyncpa %s1702, 1

</llo_original>
